<compile_context>
chip_gen: v5e
topology: v5e:2x2
jax: 0.10.0
libtpu: 0.0.40
codegen_flags: <defaults>
</compile_context>

<pallas_src>
import jax
import jax.numpy as jnp
from jax import lax
from jax.experimental import pallas as pl
from jax.experimental.pallas import tpu as pltpu

HIDDEN = 256


def _make_kernel(direction: float, gate: float):
    """Per-coupling-layer kernel; `direction`/`gate` are compile-time consts."""

    def chain(xm16, w1_ref, w234_ref, b1234_ref, w5_ref, b5_ref):
        # 5 stacked Linear layers (no nonlinearity, as in the PyTorch module).
        # bf16 weights / bf16 activations at the dot, f32 accumulation.
        h = jnp.dot(xm16, w1_ref[0],
                    preferred_element_type=jnp.float32) + b1234_ref[0, 0]
        for j in range(3):
            h = jnp.dot(h.astype(jnp.bfloat16), w234_ref[0, j],
                        preferred_element_type=jnp.float32) + b1234_ref[0, j + 1]
        h = jnp.dot(h.astype(jnp.bfloat16), w5_ref[0],
                    preferred_element_type=jnp.float32) + b5_ref[0]
        return h

    def kernel(x_ref, mask_ref,
               w1s_ref, w234s_ref, b1234s_ref, w5s_ref, b5s_ref,
               w1t_ref, w234t_ref, b1234t_ref, w5t_ref, b5t_ref,
               out_ref, logdet_ref):
        g = pl.program_id(1)                # layer axis (inner, "arbitrary")

        x = x_ref[...]                      # (TB, D) f32
        mask = mask_ref[0]                  # (1, D)
        rmask = 1.0 - mask
        xm = x * mask
        xm16 = xm.astype(jnp.bfloat16)

        # s-branch: needed every step (log_det) and on the last step (output).
        s = chain(xm16, w1s_ref, w234s_ref, b1234s_ref, w5s_ref, b5s_ref) * rmask

        @pl.when(g == 0)
        def _():
            logdet_ref[...] = jnp.zeros_like(logdet_ref)

        if gate != 0.0:  # inference (gate == 0): sum(s) * 0 == 0 -> elided.
            logdet_ref[...] = (logdet_ref[...]
                               + jnp.sum(s, axis=-1, keepdims=True) * gate)

        # t-branch + output only on the LAST layer step: `output` is recomputed
        # from the original x every layer and overwritten, so earlier layers
        # never contribute to it.
        @pl.when(g == pl.num_programs(1) - 1)
        def _():
            t = chain(xm16, w1t_ref, w234t_ref, b1234t_ref,
                      w5t_ref, b5t_ref) * rmask
            e_dir = jnp.exp(s * direction)
            if gate == 0.0:
                t_term = t                          # t * 1 * exp(s*0)
            elif gate == direction:
                t_term = t * direction * e_dir      # exp(s*gate) == exp(s*dir)
            else:
                t_term = t * direction * jnp.exp(s * gate)
            out_ref[...] = rmask * (x * e_dir) + t_term + xm

    return kernel


def _pick_batch_tile(B):
    """Batch tile: full batch for small B, else a (multiple-of-8) divisor."""
    if B <= 256:
        return B
    for tb in (512, 256, 128):
        if B % tb == 0:
            return tb
    return B


def realnvp_forward(x, params, masks, training=False):
    """Pallas implementation of RealNVP.forward(x, training) -> (output, log_det)."""
    B, D = x.shape
    w1, b1, w2, b2, w3, b3, w4, b4, w5, b5 = params
    L = masks.shape[0]
    H = w1.shape[-1]

    direction = -1.0 if training else 1.0
    gate = (direction - 1.0) / 2.0

    if training:
        # Layers are visited in reversed order; all contribute to log_det,
        # only the last visited (original layer 0) contributes to output.
        sel = lambda a: a[::-1]
        t_layer = 0
        G = L
    else:
        # Inference: gate == 0 -> log_det == 0 and only layer L-1 touches the
        # output, so a single layer step over that layer suffices.
        sel = lambda a: a[L - 1:L]
        t_layer = L - 1
        G = 1

    TB = _pick_batch_tile(B)
    NB = B // TB

    bf16 = lambda a: a.astype(jnp.bfloat16)   # cast once in the wrapper

    masks_k = sel(masks).reshape(G, 1, D)

    # s-branch: streamed one layer per grid step (packed to cut DMA count).
    w1_s = bf16(sel(w1)[:, 0])                                        # (G, D, H)
    w234_s = bf16(jnp.stack(
        [sel(w2)[:, 0], sel(w3)[:, 0], sel(w4)[:, 0]], axis=1))       # (G, 3, H, H)
    b1234_s = jnp.stack(
        [sel(b1)[:, 0], sel(b2)[:, 0], sel(b3)[:, 0], sel(b4)[:, 0]],
        axis=1)                                                       # (G, 4, 1, H)
    w5_s = bf16(sel(w5)[:, 0])                                        # (G, H, D)
    b5_s = sel(b5)[:, 0]                                              # (G, 1, D)

    # t-branch: only the last visited layer's weights, kept VMEM-resident.
    tl = slice(t_layer, t_layer + 1)
    w1_t = bf16(w1[tl, 1])                                            # (1, D, H)
    w234_t = bf16(jnp.stack([w2[tl, 1], w3[tl, 1], w4[tl, 1]], axis=1))
    b1234_t = jnp.stack([b1[tl, 1], b2[tl, 1], b3[tl, 1], b4[tl, 1]], axis=1)
    w5_t = bf16(w5[tl, 1])
    b5_t = b5[tl, 1]

    kernel = _make_kernel(direction, gate)

    in_specs = [
        pl.BlockSpec((TB, D), lambda b, g: (b, 0)),               # x (per batch tile)
        pl.BlockSpec((1, 1, D), lambda b, g: (g, 0, 0)),          # mask of layer g
        # streamed s-branch (one coupling layer per layer step)
        pl.BlockSpec((1, D, H), lambda b, g: (g, 0, 0)),          # w1_s
        pl.BlockSpec((1, 3, H, H), lambda b, g: (g, 0, 0, 0)),    # w2/w3/w4 packed
        pl.BlockSpec((1, 4, 1, H), lambda b, g: (g, 0, 0, 0)),    # b1..b4 packed
        pl.BlockSpec((1, H, D), lambda b, g: (g, 0, 0)),          # w5_s
        pl.BlockSpec((1, 1, D), lambda b, g: (g, 0, 0)),          # b5_s
        # resident t-branch (constant index_map -> DMA'd once, reused)
        pl.BlockSpec((1, D, H), lambda b, g: (0, 0, 0)),          # w1_t
        pl.BlockSpec((1, 3, H, H), lambda b, g: (0, 0, 0, 0)),    # w2/w3/w4 t
        pl.BlockSpec((1, 4, 1, H), lambda b, g: (0, 0, 0, 0)),    # b1..b4 t
        pl.BlockSpec((1, H, D), lambda b, g: (0, 0, 0)),          # w5_t
        pl.BlockSpec((1, 1, D), lambda b, g: (0, 0, 0)),          # b5_t
    ]
    out_specs = (
        pl.BlockSpec((TB, D), lambda b, g: (b, 0)),               # output
        pl.BlockSpec((TB, 1), lambda b, g: (b, 0)),               # log_det accumulator
    )

    # VMEM footprint ~2 MiB (double-buffered bf16 s-weights ~1 MiB + resident
    # t-weights ~0.5 MiB + activations) -- safe on v5e/v6e/v7x default limits.
    out, logdet = pl.pallas_call(
        kernel,
        grid=(NB, G),
        in_specs=in_specs,
        out_specs=out_specs,
        out_shape=(
            jax.ShapeDtypeStruct((B, D), jnp.float32),
            jax.ShapeDtypeStruct((B, 1), jnp.float32),
        ),
        compiler_params=pltpu.CompilerParams(
            dimension_semantics=("parallel", "arbitrary")),
    )(x, masks_k,
      w1_s, w234_s, b1234_s, w5_s, b5_s,
      w1_t, w234_t, b1234_t, w5_t, b5_t)

    return out, logdet[:, 0]


# ----------------------- pure-JAX reference (for checking) -----------------------
def realnvp_ref(x, params, masks, training=False):
    w1, b1, w2, b2, w3, b3, w4, b4, w5, b5 = params
    L = masks.shape[0]
    direction = -1 if training else 1
    gate = (direction - 1) / 2
    log_det = jnp.zeros((x.shape[0],), jnp.float32)
    output = None
    for i in list(range(L))[::direction]:
        mask = masks[i]
        rmask = 1.0 - mask
        xm = x * mask

        def chain(k):
            h = jnp.dot(xm, w1[i, k], precision=lax.Precision.HIGHEST) + b1[i, k, 0]
            h = jnp.dot(h, w2[i, k], precision=lax.Precision.HIGHEST) + b2[i, k, 0]
            h = jnp.dot(h, w3[i, k], precision=lax.Precision.HIGHEST) + b3[i, k, 0]
            h = jnp.dot(h, w4[i, k], precision=lax.Precision.HIGHEST) + b4[i, k, 0]
            h = jnp.dot(h, w5[i, k], precision=lax.Precision.HIGHEST) + b5[i, k, 0]
            return h

        s = chain(0) * rmask
        t = chain(1) * rmask
        output = (rmask * (x * jnp.exp(s * direction))
                  + t * direction * jnp.exp(s * gate) + xm)
        log_det = log_det + jnp.sum(s, axis=-1) * gate
    return output, log_det


# ----------------------- deterministic parameter construction -----------------------
def init_params(key, L, D, H):
    """PyTorch-Linear-style uniform init U(-1/sqrt(fan_in), 1/sqrt(fan_in)),
    stacked over (layer, branch) with branch 0 = s-chain, 1 = t-chain."""
    def u(k, fan_in, shape):
        bound = 1.0 / float(fan_in) ** 0.5
        return jax.random.uniform(k, shape, jnp.float32, -bound, bound)

    ks = jax.random.split(key, 10)
    w1 = u(ks[0], D, (L, 2, D, H))
    b1 = u(ks[1], D, (L, 2, 1, H))
    w2 = u(ks[2], H, (L, 2, H, H))
    b2 = u(ks[3], H, (L, 2, 1, H))
    w3 = u(ks[4], H, (L, 2, H, H))
    b3 = u(ks[5], H, (L, 2, 1, H))
    w4 = u(ks[6], H, (L, 2, H, H))
    b4 = u(ks[7], H, (L, 2, 1, H))
    w5 = u(ks[8], H, (L, 2, H, D))
    b5 = u(ks[9], H, (L, 2, 1, D))
    return (w1, b1, w2, b2, w3, b3, w4, b4, w5, b5)


def make_masks(input_dim, n_coupling_layers):
    # mask_arrays[input_dim - 1 - i][i] = 1  ->  anti-identity, list-repeated.
    anti_eye = jnp.flip(jnp.eye(input_dim, dtype=jnp.float32), axis=0)
    reps = max(1, n_coupling_layers // 2)
    masks = jnp.tile(anti_eye, (reps, 1))
    return masks[:n_coupling_layers]


if __name__ == "__main__":
    B, D = 8, 2            # input_dim = 2 as in Coupling's default
    L = 6                  # n_coupling_layers
    H = HIDDEN

    key = jax.random.PRNGKey(0)
    kx, kp = jax.random.split(key)
    x = jax.random.normal(kx, (B, D), dtype=jnp.float32)
    params = init_params(kp, L, D, H)
    masks = make_masks(D, L)

    # ---- inference path (forward default) ----
    out, logdet = realnvp_forward(x, params, masks, training=False)
    out = jax.block_until_ready(out)
    logdet = jax.block_until_ready(logdet)
    out_r, logdet_r = realnvp_ref(x, params, masks, training=False)
    assert out.shape == (B, D) and logdet.shape == (B,)
    assert jnp.allclose(out, out_r, rtol=5e-3, atol=5e-3), (
        f"inference out max diff {jnp.max(jnp.abs(out - out_r))}")
    assert jnp.allclose(logdet, logdet_r, rtol=5e-3, atol=5e-3), (
        f"inference log_det max diff {jnp.max(jnp.abs(logdet - logdet_r))}")

    # ---- training path (reversed layer order, nonzero log-det) ----
    out_t, logdet_t = realnvp_forward(x, params, masks, training=True)
    out_t = jax.block_until_ready(out_t)
    logdet_t = jax.block_until_ready(logdet_t)
    out_tr, logdet_tr = realnvp_ref(x, params, masks, training=True)
    assert jnp.allclose(out_t, out_tr, rtol=5e-3, atol=5e-3), (
        f"training out max diff {jnp.max(jnp.abs(out_t - out_tr))}")
    assert jnp.allclose(logdet_t, logdet_tr, rtol=5e-3, atol=5e-3), (
        f"training log_det max diff {jnp.max(jnp.abs(logdet_t - logdet_tr))}")

    print("KERNEL_OK")
</pallas_src>

<mosaic_0001>
module attributes {stable_mosaic.version = 11 : i64} {
  func.func @kernel(%arg0: i32, %arg1: i32, %arg2: memref<8x2xf32, #tpu.memory_space<vmem>>, %arg3: memref<1x1x2xf32, #tpu.memory_space<vmem>>, %arg4: memref<1x2x256xbf16, #tpu.memory_space<vmem>>, %arg5: memref<1x3x256x256xbf16, #tpu.memory_space<vmem>>, %arg6: memref<1x4x1x256xf32, #tpu.memory_space<vmem>>, %arg7: memref<1x256x2xbf16, #tpu.memory_space<vmem>>, %arg8: memref<1x1x2xf32, #tpu.memory_space<vmem>>, %arg9: memref<1x2x256xbf16, #tpu.memory_space<vmem>>, %arg10: memref<1x3x256x256xbf16, #tpu.memory_space<vmem>>, %arg11: memref<1x4x1x256xf32, #tpu.memory_space<vmem>>, %arg12: memref<1x256x2xbf16, #tpu.memory_space<vmem>>, %arg13: memref<1x1x2xf32, #tpu.memory_space<vmem>>, %arg14: memref<8x2xf32, #tpu.memory_space<vmem>>, %arg15: memref<8x1xf32, #tpu.memory_space<vmem>>) attributes {dimension_semantics = [#tpu.dimension_semantics<parallel>, #tpu.dimension_semantics<arbitrary>], iteration_bounds = array<i64: 1, 1>, scalar_prefetch = 0 : i64, scratch_operands = 0 : i64, tpu.core_type = #tpu.core_type<tc>, window_params = [{transform_indices = @transform_0, window_bounds = array<i64: 8, 2>}, {transform_indices = @transform_1, window_bounds = array<i64: 1, 1, 2>}, {transform_indices = @transform_2, window_bounds = array<i64: 1, 2, 256>}, {transform_indices = @transform_3, window_bounds = array<i64: 1, 3, 256, 256>}, {transform_indices = @transform_4, window_bounds = array<i64: 1, 4, 1, 256>}, {transform_indices = @transform_5, window_bounds = array<i64: 1, 256, 2>}, {transform_indices = @transform_6, window_bounds = array<i64: 1, 1, 2>}, {pipeline_mode = #tpu.pipeline_mode<synchronous>, transform_indices = @transform_7, window_bounds = array<i64: 1, 2, 256>}, {pipeline_mode = #tpu.pipeline_mode<synchronous>, transform_indices = @transform_8, window_bounds = array<i64: 1, 3, 256, 256>}, {pipeline_mode = #tpu.pipeline_mode<synchronous>, transform_indices = @transform_9, window_bounds = array<i64: 1, 4, 1, 256>}, {pipeline_mode = #tpu.pipeline_mode<synchronous>, transform_indices = @transform_10, window_bounds = array<i64: 1, 256, 2>}, {pipeline_mode = #tpu.pipeline_mode<synchronous>, transform_indices = @transform_11, window_bounds = array<i64: 1, 1, 2>}, {transform_indices = @transform_12, window_bounds = array<i64: 8, 2>}, {transform_indices = @transform_13, window_bounds = array<i64: 8, 1>}]} {
    %c0 = arith.constant 0 : index
    %c0_0 = arith.constant 0 : index
    %0 = vector.load %arg2[%c0, %c0_0] : memref<8x2xf32, #tpu.memory_space<vmem>>, vector<8x2xf32>
    %c0_1 = arith.constant 0 : index
    %c0_2 = arith.constant 0 : index
    %c0_3 = arith.constant 0 : index
    %1 = vector.load %arg3[%c0_1, %c0_2, %c0_3] : memref<1x1x2xf32, #tpu.memory_space<vmem>>, vector<1x1x2xf32>
    %2 = vector.shape_cast %1 : vector<1x1x2xf32> to vector<1x2xf32>
    %cst = arith.constant 1.000000e+00 : f32
    %3 = vector.broadcast %cst : f32 to vector<1x2xf32>
    %4 = arith.subf %3, %2 : vector<1x2xf32>
    %5 = vector.broadcast %2 : vector<1x2xf32> to vector<8x2xf32>
    %6 = arith.mulf %0, %5 : vector<8x2xf32>
    %7 = arith.truncf %6 : vector<8x2xf32> to vector<8x2xbf16>
    %c0_4 = arith.constant 0 : index
    %c0_5 = arith.constant 0 : index
    %c0_6 = arith.constant 0 : index
    %8 = vector.load %arg4[%c0_4, %c0_5, %c0_6] : memref<1x2x256xbf16, #tpu.memory_space<vmem>>, vector<1x2x256xbf16>
    %9 = vector.shape_cast %8 : vector<1x2x256xbf16> to vector<2x256xbf16>
    %cst_7 = arith.constant dense<0.000000e+00> : vector<8x256xf32>
    %10 = tpu.matmul %7, %9, %cst_7 {dimension_numbers = #tpu.dot_dimension_numbers<[1], [0], [0], [1], [0, 0, 1, 1], [], []>} : vector<8x2xbf16>, vector<2x256xbf16>, vector<8x256xf32> -> vector<8x256xf32>
    %c0_8 = arith.constant 0 : index
    %c0_9 = arith.constant 0 : index
    %c0_10 = arith.constant 0 : index
    %c0_11 = arith.constant 0 : index
    %11 = vector.load %arg6[%c0_8, %c0_9, %c0_10, %c0_11] : memref<1x4x1x256xf32, #tpu.memory_space<vmem>>, vector<1x1x1x256xf32>
    %12 = vector.shape_cast %11 : vector<1x1x1x256xf32> to vector<1x256xf32>
    %13 = vector.broadcast %12 : vector<1x256xf32> to vector<8x256xf32>
    %14 = arith.addf %10, %13 : vector<8x256xf32>
    %15 = arith.truncf %14 : vector<8x256xf32> to vector<8x256xbf16>
    %c0_12 = arith.constant 0 : index
    %c0_13 = arith.constant 0 : index
    %c0_14 = arith.constant 0 : index
    %c0_15 = arith.constant 0 : index
    %16 = vector.load %arg5[%c0_12, %c0_13, %c0_14, %c0_15] : memref<1x3x256x256xbf16, #tpu.memory_space<vmem>>, vector<1x1x256x256xbf16>
    %17 = vector.shape_cast %16 : vector<1x1x256x256xbf16> to vector<256x256xbf16>
    %cst_16 = arith.constant dense<0.000000e+00> : vector<8x256xf32>
    %18 = tpu.matmul %15, %17, %cst_16 {dimension_numbers = #tpu.dot_dimension_numbers<[1], [0], [0], [1], [0, 0, 1, 1], [], []>} : vector<8x256xbf16>, vector<256x256xbf16>, vector<8x256xf32> -> vector<8x256xf32>
    %c0_17 = arith.constant 0 : index
    %c1 = arith.constant 1 : index
    %c0_18 = arith.constant 0 : index
    %c0_19 = arith.constant 0 : index
    %19 = vector.load %arg6[%c0_17, %c1, %c0_18, %c0_19] : memref<1x4x1x256xf32, #tpu.memory_space<vmem>>, vector<1x1x1x256xf32>
    %20 = vector.shape_cast %19 : vector<1x1x1x256xf32> to vector<1x256xf32>
    %21 = vector.broadcast %20 : vector<1x256xf32> to vector<8x256xf32>
    %22 = arith.addf %18, %21 : vector<8x256xf32>
    %23 = arith.truncf %22 : vector<8x256xf32> to vector<8x256xbf16>
    %c0_20 = arith.constant 0 : index
    %c1_21 = arith.constant 1 : index
    %c0_22 = arith.constant 0 : index
    %c0_23 = arith.constant 0 : index
    %24 = vector.load %arg5[%c0_20, %c1_21, %c0_22, %c0_23] : memref<1x3x256x256xbf16, #tpu.memory_space<vmem>>, vector<1x1x256x256xbf16>
    %25 = vector.shape_cast %24 : vector<1x1x256x256xbf16> to vector<256x256xbf16>
    %cst_24 = arith.constant dense<0.000000e+00> : vector<8x256xf32>
    %26 = tpu.matmul %23, %25, %cst_24 {dimension_numbers = #tpu.dot_dimension_numbers<[1], [0], [0], [1], [0, 0, 1, 1], [], []>} : vector<8x256xbf16>, vector<256x256xbf16>, vector<8x256xf32> -> vector<8x256xf32>
    %c0_25 = arith.constant 0 : index
    %c2 = arith.constant 2 : index
    %c0_26 = arith.constant 0 : index
    %c0_27 = arith.constant 0 : index
    %27 = vector.load %arg6[%c0_25, %c2, %c0_26, %c0_27] : memref<1x4x1x256xf32, #tpu.memory_space<vmem>>, vector<1x1x1x256xf32>
    %28 = vector.shape_cast %27 : vector<1x1x1x256xf32> to vector<1x256xf32>
    %29 = vector.broadcast %28 : vector<1x256xf32> to vector<8x256xf32>
    %30 = arith.addf %26, %29 : vector<8x256xf32>
    %31 = arith.truncf %30 : vector<8x256xf32> to vector<8x256xbf16>
    %c0_28 = arith.constant 0 : index
    %c2_29 = arith.constant 2 : index
    %c0_30 = arith.constant 0 : index
    %c0_31 = arith.constant 0 : index
    %32 = vector.load %arg5[%c0_28, %c2_29, %c0_30, %c0_31] : memref<1x3x256x256xbf16, #tpu.memory_space<vmem>>, vector<1x1x256x256xbf16>
    %33 = vector.shape_cast %32 : vector<1x1x256x256xbf16> to vector<256x256xbf16>
    %cst_32 = arith.constant dense<0.000000e+00> : vector<8x256xf32>
    %34 = tpu.matmul %31, %33, %cst_32 {dimension_numbers = #tpu.dot_dimension_numbers<[1], [0], [0], [1], [0, 0, 1, 1], [], []>} : vector<8x256xbf16>, vector<256x256xbf16>, vector<8x256xf32> -> vector<8x256xf32>
    %c0_33 = arith.constant 0 : index
    %c3 = arith.constant 3 : index
    %c0_34 = arith.constant 0 : index
    %c0_35 = arith.constant 0 : index
    %35 = vector.load %arg6[%c0_33, %c3, %c0_34, %c0_35] : memref<1x4x1x256xf32, #tpu.memory_space<vmem>>, vector<1x1x1x256xf32>
    %36 = vector.shape_cast %35 : vector<1x1x1x256xf32> to vector<1x256xf32>
    %37 = vector.broadcast %36 : vector<1x256xf32> to vector<8x256xf32>
    %38 = arith.addf %34, %37 : vector<8x256xf32>
    %39 = arith.truncf %38 : vector<8x256xf32> to vector<8x256xbf16>
    %c0_36 = arith.constant 0 : index
    %c0_37 = arith.constant 0 : index
    %c0_38 = arith.constant 0 : index
    %40 = vector.load %arg7[%c0_36, %c0_37, %c0_38] : memref<1x256x2xbf16, #tpu.memory_space<vmem>>, vector<1x256x2xbf16>
    %41 = vector.shape_cast %40 : vector<1x256x2xbf16> to vector<256x2xbf16>
    %cst_39 = arith.constant dense<0.000000e+00> : vector<8x2xf32>
    %42 = tpu.matmul %39, %41, %cst_39 {dimension_numbers = #tpu.dot_dimension_numbers<[1], [0], [0], [1], [0, 0, 1, 1], [], []>} : vector<8x256xbf16>, vector<256x2xbf16>, vector<8x2xf32> -> vector<8x2xf32>
    %c0_40 = arith.constant 0 : index
    %c0_41 = arith.constant 0 : index
    %c0_42 = arith.constant 0 : index
    %43 = vector.load %arg8[%c0_40, %c0_41, %c0_42] : memref<1x1x2xf32, #tpu.memory_space<vmem>>, vector<1x1x2xf32>
    %44 = vector.shape_cast %43 : vector<1x1x2xf32> to vector<1x2xf32>
    %45 = vector.broadcast %44 : vector<1x2xf32> to vector<8x2xf32>
    %46 = arith.addf %42, %45 : vector<8x2xf32>
    %47 = vector.broadcast %4 : vector<1x2xf32> to vector<8x2xf32>
    %48 = arith.mulf %46, %47 : vector<8x2xf32>
    %c0_i32 = arith.constant 0 : i32
    %49 = arith.cmpi eq, %arg1, %c0_i32 : i32
    %50 = arith.extui %49 : i1 to i32
    %c0_i32_43 = arith.constant 0 : i32
    %51 = arith.cmpi ne, %50, %c0_i32_43 : i32
    scf.if %51 {
      %cst_46 = arith.constant 0.000000e+00 : f32
      %55 = vector.broadcast %cst_46 : f32 to vector<8x1xf32>
      %c0_47 = arith.constant 0 : index
      %c0_48 = arith.constant 0 : index
      %56 = vector.load %arg15[%c0_47, %c0_48] : memref<8x1xf32, #tpu.memory_space<vmem>>, vector<8x1xf32>
      tpu.vector_store %arg15[%c0_47, %c0_48], %55 {strides = array<i32>} : memref<8x1xf32, #tpu.memory_space<vmem>>, vector<8x1xf32>,
    } else {
    }
    %c0_i32_44 = arith.constant 0 : i32
    %52 = arith.cmpi eq, %arg1, %c0_i32_44 : i32
    %53 = arith.extui %52 : i1 to i32
    %c0_i32_45 = arith.constant 0 : i32
    %54 = arith.cmpi ne, %53, %c0_i32_45 : i32
    scf.if %54 {
      %c0_46 = arith.constant 0 : index
      %c0_47 = arith.constant 0 : index
      %c0_48 = arith.constant 0 : index
      %55 = vector.load %arg9[%c0_46, %c0_47, %c0_48] : memref<1x2x256xbf16, #tpu.memory_space<vmem>>, vector<1x2x256xbf16>
      %56 = vector.shape_cast %55 : vector<1x2x256xbf16> to vector<2x256xbf16>
      %cst_49 = arith.constant dense<0.000000e+00> : vector<8x256xf32>
      %57 = tpu.matmul %7, %56, %cst_49 {dimension_numbers = #tpu.dot_dimension_numbers<[1], [0], [0], [1], [0, 0, 1, 1], [], []>} : vector<8x2xbf16>, vector<2x256xbf16>, vector<8x256xf32> -> vector<8x256xf32>
      %c0_50 = arith.constant 0 : index
      %c0_51 = arith.constant 0 : index
      %c0_52 = arith.constant 0 : index
      %c0_53 = arith.constant 0 : index
      %58 = vector.load %arg11[%c0_50, %c0_51, %c0_52, %c0_53] : memref<1x4x1x256xf32, #tpu.memory_space<vmem>>, vector<1x1x1x256xf32>
      %59 = vector.shape_cast %58 : vector<1x1x1x256xf32> to vector<1x256xf32>
      %60 = vector.broadcast %59 : vector<1x256xf32> to vector<8x256xf32>
      %61 = arith.addf %57, %60 : vector<8x256xf32>
      %62 = arith.truncf %61 : vector<8x256xf32> to vector<8x256xbf16>
      %c0_54 = arith.constant 0 : index
      %c0_55 = arith.constant 0 : index
      %c0_56 = arith.constant 0 : index
      %c0_57 = arith.constant 0 : index
      %63 = vector.load %arg10[%c0_54, %c0_55, %c0_56, %c0_57] : memref<1x3x256x256xbf16, #tpu.memory_space<vmem>>, vector<1x1x256x256xbf16>
      %64 = vector.shape_cast %63 : vector<1x1x256x256xbf16> to vector<256x256xbf16>
      %cst_58 = arith.constant dense<0.000000e+00> : vector<8x256xf32>
      %65 = tpu.matmul %62, %64, %cst_58 {dimension_numbers = #tpu.dot_dimension_numbers<[1], [0], [0], [1], [0, 0, 1, 1], [], []>} : vector<8x256xbf16>, vector<256x256xbf16>, vector<8x256xf32> -> vector<8x256xf32>
      %c0_59 = arith.constant 0 : index
      %c1_60 = arith.constant 1 : index
      %c0_61 = arith.constant 0 : index
      %c0_62 = arith.constant 0 : index
      %66 = vector.load %arg11[%c0_59, %c1_60, %c0_61, %c0_62] : memref<1x4x1x256xf32, #tpu.memory_space<vmem>>, vector<1x1x1x256xf32>
      %67 = vector.shape_cast %66 : vector<1x1x1x256xf32> to vector<1x256xf32>
      %68 = vector.broadcast %67 : vector<1x256xf32> to vector<8x256xf32>
      %69 = arith.addf %65, %68 : vector<8x256xf32>
      %70 = arith.truncf %69 : vector<8x256xf32> to vector<8x256xbf16>
      %c0_63 = arith.constant 0 : index
      %c1_64 = arith.constant 1 : index
      %c0_65 = arith.constant 0 : index
      %c0_66 = arith.constant 0 : index
      %71 = vector.load %arg10[%c0_63, %c1_64, %c0_65, %c0_66] : memref<1x3x256x256xbf16, #tpu.memory_space<vmem>>, vector<1x1x256x256xbf16>
      %72 = vector.shape_cast %71 : vector<1x1x256x256xbf16> to vector<256x256xbf16>
      %cst_67 = arith.constant dense<0.000000e+00> : vector<8x256xf32>
      %73 = tpu.matmul %70, %72, %cst_67 {dimension_numbers = #tpu.dot_dimension_numbers<[1], [0], [0], [1], [0, 0, 1, 1], [], []>} : vector<8x256xbf16>, vector<256x256xbf16>, vector<8x256xf32> -> vector<8x256xf32>
      %c0_68 = arith.constant 0 : index
      %c2_69 = arith.constant 2 : index
      %c0_70 = arith.constant 0 : index
      %c0_71 = arith.constant 0 : index
      %74 = vector.load %arg11[%c0_68, %c2_69, %c0_70, %c0_71] : memref<1x4x1x256xf32, #tpu.memory_space<vmem>>, vector<1x1x1x256xf32>
      %75 = vector.shape_cast %74 : vector<1x1x1x256xf32> to vector<1x256xf32>
      %76 = vector.broadcast %75 : vector<1x256xf32> to vector<8x256xf32>
      %77 = arith.addf %73, %76 : vector<8x256xf32>
      %78 = arith.truncf %77 : vector<8x256xf32> to vector<8x256xbf16>
      %c0_72 = arith.constant 0 : index
      %c2_73 = arith.constant 2 : index
      %c0_74 = arith.constant 0 : index
      %c0_75 = arith.constant 0 : index
      %79 = vector.load %arg10[%c0_72, %c2_73, %c0_74, %c0_75] : memref<1x3x256x256xbf16, #tpu.memory_space<vmem>>, vector<1x1x256x256xbf16>
      %80 = vector.shape_cast %79 : vector<1x1x256x256xbf16> to vector<256x256xbf16>
      %cst_76 = arith.constant dense<0.000000e+00> : vector<8x256xf32>
      %81 = tpu.matmul %78, %80, %cst_76 {dimension_numbers = #tpu.dot_dimension_numbers<[1], [0], [0], [1], [0, 0, 1, 1], [], []>} : vector<8x256xbf16>, vector<256x256xbf16>, vector<8x256xf32> -> vector<8x256xf32>
      %c0_77 = arith.constant 0 : index
      %c3_78 = arith.constant 3 : index
      %c0_79 = arith.constant 0 : index
      %c0_80 = arith.constant 0 : index
      %82 = vector.load %arg11[%c0_77, %c3_78, %c0_79, %c0_80] : memref<1x4x1x256xf32, #tpu.memory_space<vmem>>, vector<1x1x1x256xf32>
      %83 = vector.shape_cast %82 : vector<1x1x1x256xf32> to vector<1x256xf32>
      %84 = vector.broadcast %83 : vector<1x256xf32> to vector<8x256xf32>
      %85 = arith.addf %81, %84 : vector<8x256xf32>
      %86 = arith.truncf %85 : vector<8x256xf32> to vector<8x256xbf16>
      %c0_81 = arith.constant 0 : index
      %c0_82 = arith.constant 0 : index
      %c0_83 = arith.constant 0 : index
      %87 = vector.load %arg12[%c0_81, %c0_82, %c0_83] : memref<1x256x2xbf16, #tpu.memory_space<vmem>>, vector<1x256x2xbf16>
      %88 = vector.shape_cast %87 : vector<1x256x2xbf16> to vector<256x2xbf16>
      %cst_84 = arith.constant dense<0.000000e+00> : vector<8x2xf32>
      %89 = tpu.matmul %86, %88, %cst_84 {dimension_numbers = #tpu.dot_dimension_numbers<[1], [0], [0], [1], [0, 0, 1, 1], [], []>} : vector<8x256xbf16>, vector<256x2xbf16>, vector<8x2xf32> -> vector<8x2xf32>
      %c0_85 = arith.constant 0 : index
      %c0_86 = arith.constant 0 : index
      %c0_87 = arith.constant 0 : index
      %90 = vector.load %arg13[%c0_85, %c0_86, %c0_87] : memref<1x1x2xf32, #tpu.memory_space<vmem>>, vector<1x1x2xf32>
      %91 = vector.shape_cast %90 : vector<1x1x2xf32> to vector<1x2xf32>
      %92 = vector.broadcast %91 : vector<1x2xf32> to vector<8x2xf32>
      %93 = arith.addf %89, %92 : vector<8x2xf32>
      %94 = vector.broadcast %4 : vector<1x2xf32> to vector<8x2xf32>
      %95 = arith.mulf %93, %94 : vector<8x2xf32>
      %cst_88 = arith.constant 1.000000e+00 : f32
      %96 = vector.broadcast %cst_88 : f32 to vector<8x2xf32>
      %97 = arith.mulf %48, %96 : vector<8x2xf32>
      %98 = math.exp %97 : vector<8x2xf32>
      %99 = arith.mulf %0, %98 : vector<8x2xf32>
      %100 = vector.broadcast %4 : vector<1x2xf32> to vector<8x2xf32>
      %101 = arith.mulf %100, %99 : vector<8x2xf32>
      %102 = arith.addf %101, %95 : vector<8x2xf32>
      %103 = arith.addf %102, %6 : vector<8x2xf32>
      %c0_89 = arith.constant 0 : index
      %c0_90 = arith.constant 0 : index
      %104 = vector.load %arg14[%c0_89, %c0_90] : memref<8x2xf32, #tpu.memory_space<vmem>>, vector<8x2xf32>
      tpu.vector_store %arg14[%c0_89, %c0_90], %103 {strides = array<i32>} : memref<8x2xf32, #tpu.memory_space<vmem>>, vector<8x2xf32>,
    } else {
    }
    return
  }
  func.func @transform_0(%arg0: i32, %arg1: i32) -> (i32, i32) {
    %c0_i32 = arith.constant 0 : i32
    %c0_i32_0 = arith.constant 0 : i32
    return %arg0, %c0_i32 : i32, i32
  }
  func.func @transform_1(%arg0: i32, %arg1: i32) -> (i32, i32, i32) {
    %c0_i32 = arith.constant 0 : i32
    %c0_i32_0 = arith.constant 0 : i32
    %c0_i32_1 = arith.constant 0 : i32
    return %arg1, %c0_i32, %c0_i32_0 : i32, i32, i32
  }
  func.func @transform_2(%arg0: i32, %arg1: i32) -> (i32, i32, i32) {
    %c0_i32 = arith.constant 0 : i32
    %c0_i32_0 = arith.constant 0 : i32
    %c0_i32_1 = arith.constant 0 : i32
    return %arg1, %c0_i32, %c0_i32_0 : i32, i32, i32
  }
  func.func @transform_3(%arg0: i32, %arg1: i32) -> (i32, i32, i32, i32) {
    %c0_i32 = arith.constant 0 : i32
    %c0_i32_0 = arith.constant 0 : i32
    %c0_i32_1 = arith.constant 0 : i32
    %c0_i32_2 = arith.constant 0 : i32
    return %arg1, %c0_i32, %c0_i32_0, %c0_i32_1 : i32, i32, i32, i32
  }
  func.func @transform_4(%arg0: i32, %arg1: i32) -> (i32, i32, i32, i32) {
    %c0_i32 = arith.constant 0 : i32
    %c0_i32_0 = arith.constant 0 : i32
    %c0_i32_1 = arith.constant 0 : i32
    %c0_i32_2 = arith.constant 0 : i32
    return %arg1, %c0_i32, %c0_i32_0, %c0_i32_1 : i32, i32, i32, i32
  }
  func.func @transform_5(%arg0: i32, %arg1: i32) -> (i32, i32, i32) {
    %c0_i32 = arith.constant 0 : i32
    %c0_i32_0 = arith.constant 0 : i32
    %c0_i32_1 = arith.constant 0 : i32
    return %arg1, %c0_i32, %c0_i32_0 : i32, i32, i32
  }
  func.func @transform_6(%arg0: i32, %arg1: i32) -> (i32, i32, i32) {
    %c0_i32 = arith.constant 0 : i32
    %c0_i32_0 = arith.constant 0 : i32
    %c0_i32_1 = arith.constant 0 : i32
    return %arg1, %c0_i32, %c0_i32_0 : i32, i32, i32
  }
  func.func @transform_7(%arg0: i32, %arg1: i32) -> (i32, i32, i32) {
    %c0_i32 = arith.constant 0 : i32
    %c0_i32_0 = arith.constant 0 : i32
    %c0_i32_1 = arith.constant 0 : i32
    %c0_i32_2 = arith.constant 0 : i32
    return %c0_i32, %c0_i32_0, %c0_i32_1 : i32, i32, i32
  }
  func.func @transform_8(%arg0: i32, %arg1: i32) -> (i32, i32, i32, i32) {
    %c0_i32 = arith.constant 0 : i32
    %c0_i32_0 = arith.constant 0 : i32
    %c0_i32_1 = arith.constant 0 : i32
    %c0_i32_2 = arith.constant 0 : i32
    %c0_i32_3 = arith.constant 0 : i32
    return %c0_i32, %c0_i32_0, %c0_i32_1, %c0_i32_2 : i32, i32, i32, i32
  }
  func.func @transform_9(%arg0: i32, %arg1: i32) -> (i32, i32, i32, i32) {
    %c0_i32 = arith.constant 0 : i32
    %c0_i32_0 = arith.constant 0 : i32
    %c0_i32_1 = arith.constant 0 : i32
    %c0_i32_2 = arith.constant 0 : i32
    %c0_i32_3 = arith.constant 0 : i32
    return %c0_i32, %c0_i32_0, %c0_i32_1, %c0_i32_2 : i32, i32, i32, i32
  }
  func.func @transform_10(%arg0: i32, %arg1: i32) -> (i32, i32, i32) {
    %c0_i32 = arith.constant 0 : i32
    %c0_i32_0 = arith.constant 0 : i32
    %c0_i32_1 = arith.constant 0 : i32
    %c0_i32_2 = arith.constant 0 : i32
    return %c0_i32, %c0_i32_0, %c0_i32_1 : i32, i32, i32
  }
  func.func @transform_11(%arg0: i32, %arg1: i32) -> (i32, i32, i32) {
    %c0_i32 = arith.constant 0 : i32
    %c0_i32_0 = arith.constant 0 : i32
    %c0_i32_1 = arith.constant 0 : i32
    %c0_i32_2 = arith.constant 0 : i32
    return %c0_i32, %c0_i32_0, %c0_i32_1 : i32, i32, i32
  }
  func.func @transform_12(%arg0: i32, %arg1: i32) -> (i32, i32) {
    %c0_i32 = arith.constant 0 : i32
    %c0_i32_0 = arith.constant 0 : i32
    return %arg0, %c0_i32 : i32, i32
  }
  func.func @transform_13(%arg0: i32, %arg1: i32) -> (i32, i32) {
    %c0_i32 = arith.constant 0 : i32
    %c0_i32_0 = arith.constant 0 : i32
    return %arg0, %c0_i32 : i32, i32
  }
}

</mosaic_0001>

<llo_original>
// kernel: tpu_custom_call.1
$region0: #{tpu_custom_call.1}
  #allocation0 [shape = 'u32[]', space=smem, size = 0x4, offset = 0x4, fixed_abs, tag = 'smem constant byte address 0x4 - core index']
  #allocation1 [shape = 'u32[72,128]{1,0:T(1,128)}', space=vmem, size = 0x9000, scoped, tag = 'internal scratch']
  %s0 = inlined_call_operand.vmem [shape: f32[8,2], index: 0, kind: input, shape index: {}]
  %s1 = inlined_call_operand.vmem [shape: f32[1,1,2], index: 1, kind: input, shape index: {}]
  %s2 = inlined_call_operand.vmem [shape: bf16[1,2,256], index: 2, kind: input, shape index: {}]
  %s3 = inlined_call_operand.hbm [shape: bf16[1,3,256,256], index: 3, kind: input, shape index: {}]
  %s4 = inlined_call_operand.vmem [shape: f32[1,4,1,256], index: 4, kind: input, shape index: {}]
  %s5 = inlined_call_operand.vmem [shape: bf16[1,256,2], index: 5, kind: input, shape index: {}]
  %s6 = inlined_call_operand.vmem [shape: f32[1,1,2], index: 6, kind: input, shape index: {}]
  %s7 = inlined_call_operand.vmem [shape: bf16[1,2,256], index: 7, kind: input, shape index: {}]
  %s8 = inlined_call_operand.hbm [shape: bf16[1,3,256,256], index: 8, kind: input, shape index: {}]
  %s9 = inlined_call_operand.vmem [shape: f32[1,4,1,256], index: 9, kind: input, shape index: {}]
  %s10 = inlined_call_operand.vmem [shape: bf16[1,256,2], index: 10, kind: input, shape index: {}]
  %s11 = inlined_call_operand.vmem [shape: f32[1,1,2], index: 11, kind: input, shape index: {}]
  %s12 = inlined_call_operand.vmem [shape: f32[8,2], index: 12, kind: output, shape index: {0}]
  %s13 = inlined_call_operand.vmem [shape: f32[8,1], index: 13, kind: output, shape index: {1}]
  %14 = xla_tuple %s12, %s13
  %s15 = sld [smem:[#allocation0]]
  $region78: #{tpu_custom_call.1} parent=0
    _
  %s17 = ssub.s32 1, %s15
  %s18 = scalar_select 0, %s17, %s15
  $region1: #{tpu_custom_call.1} parent=0
    #allocation2 [shape = 'u8[393216]{0}', space=vmem, size = 0x60000, scoped, tag = 'input window, operand 3, single buffered']
    #allocation3 [shape = 's32[1]{0}', space=sflag, size = 0x4, scoped, tag = 'scoped memory for tpu_custom_call.1']
    #allocation4 [shape = 'u8[393216]{0}', space=vmem, size = 0x60000, scoped, tag = 'input window, operand 8, single buffered']
    #allocation5 [shape = 's32[1]{0}', space=sflag, size = 0x4, scoped, tag = 'scoped memory for tpu_custom_call.1']
    %19 = vsyncpa [#allocation3], 0
    %20 = vsyncpa [#allocation5], 0
    // Predicated region
    $region2: #{tpu_custom_call.1} parent=1 // pred_check
      _
    $region3: #{tpu_custom_call.1} parent=1 // pred_check_branch
      %22 = sbr.rel (0) target = $region5
    $region4: #{tpu_custom_call.1} parent=1 // pred_region
      _
    $region5: #{tpu_custom_call.1} parent=1 // pred_fallthru
      _
    // Predicated region
    $region6: #{tpu_custom_call.1} parent=1 // pred_check
      _
    $region7: #{tpu_custom_call.1} parent=1 // pred_check_branch
      %24 = sbr.rel (0) target = $region9
    $region8: #{tpu_custom_call.1} parent=1 // pred_region
      _
    $region9: #{tpu_custom_call.1} parent=1 // pred_fallthru
      _
    // Predicated region
    $region10: #{tpu_custom_call.1} parent=1 // pred_check
      _
    $region11: #{tpu_custom_call.1} parent=1 // pred_check_branch
      %26 = sbr.rel (0) target = $region13
    $region12: #{tpu_custom_call.1} parent=1 // pred_region
      _
    $region13: #{tpu_custom_call.1} parent=1 // pred_fallthru
      _
    // Predicated region
    $region14: #{tpu_custom_call.1} parent=1 // pred_check
      _
    $region15: #{tpu_custom_call.1} parent=1 // pred_check_branch
      %28 = sbr.rel (0) target = $region17
    $region16: #{tpu_custom_call.1} parent=1 // pred_region
      %30 = vsyncadd [#allocation3], 0
      %s31 = sshll.u32 %s3, 4
      %s32 = int_to_ptr.hbm [resolvable:$true] %s31
      %s33 = sshll.u32 [#allocation2], 4
      %s34 = int_to_ptr.vmem [resolvable:$true] %s33
      %39 = dma.hbm_to_vmem [thread:$0]  %s32, 12288, %s34, [#allocation3], 128, 128, 8
    $region17: #{tpu_custom_call.1} parent=1 // pred_fallthru
      _
    // Predicated region
    $region18: #{tpu_custom_call.1} parent=1 // pred_check
      _
    $region19: #{tpu_custom_call.1} parent=1 // pred_check_branch
      %41 = sbr.rel (0) target = $region21
    $region20: #{tpu_custom_call.1} parent=1 // pred_region
      _
    $region21: #{tpu_custom_call.1} parent=1 // pred_fallthru
      _
    // Predicated region
    $region22: #{tpu_custom_call.1} parent=1 // pred_check
      _
    $region23: #{tpu_custom_call.1} parent=1 // pred_check_branch
      %43 = sbr.rel (0) target = $region25
    $region24: #{tpu_custom_call.1} parent=1 // pred_region
      _
    $region25: #{tpu_custom_call.1} parent=1 // pred_fallthru
      _
    // Predicated region
    $region26: #{tpu_custom_call.1} parent=1 // pred_check
      _
    $region27: #{tpu_custom_call.1} parent=1 // pred_check_branch
      %45 = sbr.rel (0) target = $region29
    $region28: #{tpu_custom_call.1} parent=1 // pred_region
      _
    $region29: #{tpu_custom_call.1} parent=1 // pred_fallthru
      _
    // Predicated region
    $region30: #{tpu_custom_call.1} parent=1 // pred_check
      _
    $region31: #{tpu_custom_call.1} parent=1 // pred_check_branch
      %47 = sbr.rel (0) target = $region33
    $region32: #{tpu_custom_call.1} parent=1 // pred_region
      _
    $region33: #{tpu_custom_call.1} parent=1 // pred_fallthru
      _
    // Predicated region
    $region34: #{tpu_custom_call.1} parent=1 // pred_check
      _
    $region35: #{tpu_custom_call.1} parent=1 // pred_check_branch
      %49 = sbr.rel (0) target = $region37
    $region36: #{tpu_custom_call.1} parent=1 // pred_region
      %51 = vsyncadd [#allocation5], 0
      %s52 = sshll.u32 %s8, 4
      %s53 = int_to_ptr.hbm [resolvable:$true] %s52
      %s54 = sshll.u32 [#allocation4], 4
      %s55 = int_to_ptr.vmem [resolvable:$true] %s54
      %60 = dma.hbm_to_vmem [thread:$0]  %s53, 12288, %s55, [#allocation5], 128, 128, 8
    $region37: #{tpu_custom_call.1} parent=1 // pred_fallthru
      _
    // Predicated region
    $region38: #{tpu_custom_call.1} parent=1 // pred_check
      _
    $region39: #{tpu_custom_call.1} parent=1 // pred_check_branch
      %62 = sbr.rel (0) target = $region41
    $region40: #{tpu_custom_call.1} parent=1 // pred_region
      _
    $region41: #{tpu_custom_call.1} parent=1 // pred_fallthru
      _
    // Predicated region
    $region42: #{tpu_custom_call.1} parent=1 // pred_check
      _
    $region43: #{tpu_custom_call.1} parent=1 // pred_check_branch
      %64 = sbr.rel (0) target = $region45
    $region44: #{tpu_custom_call.1} parent=1 // pred_region
      _
    $region45: #{tpu_custom_call.1} parent=1 // pred_fallthru
      _
    // Predicated region
    $region46: #{tpu_custom_call.1} parent=1 // pred_check
      _
    $region47: #{tpu_custom_call.1} parent=1 // pred_check_branch
      %66 = sbr.rel (0) target = $region49
    $region48: #{tpu_custom_call.1} parent=1 // pred_region
      _
    $region49: #{tpu_custom_call.1} parent=1 // pred_fallthru
      _
    // Predicated region
    $region50: #{tpu_custom_call.1} parent=1 // pred_check
      _
    $region51: #{tpu_custom_call.1} parent=1 // pred_check_branch
      %68 = sbr.rel (0) target = $region53
    $region52: #{tpu_custom_call.1} parent=1 // pred_region
      %70 = dma.done [#allocation3], 12288
    $region53: #{tpu_custom_call.1} parent=1 // pred_fallthru
      _
    // Predicated region
    $region54: #{tpu_custom_call.1} parent=1 // pred_check
      _
    $region55: #{tpu_custom_call.1} parent=1 // pred_check_branch
      %72 = sbr.rel (0) target = $region57
    $region56: #{tpu_custom_call.1} parent=1 // pred_region
      %74 = dma.done [#allocation5], 12288
    $region57: #{tpu_custom_call.1} parent=1 // pred_fallthru
      _
    %v76 = vld [vmem:[%s0] sm:$0xff]
    %v77 = vld [vmem:[%s1] sm:$0x1]
    %v78 = vsub.f32 1.0, %v77
    %v80 = vperm.slane %v77, 0
    %v82 = vmul.f32 %v76, %v80
    %v83 = vpack.c.bf16 %v82, %v82
    %v84 = vld [vmem:[%s2] sm:$0x3]
    %v85 = vld [vmem:[%s4] sm:$0x3]
    %v87 = vperm.slane %v85, 0
    %v88 = vperm.slane %v85, 1
    %92 = vst [vmem:[#allocation1] ss:$9 sm:$0xff] %v84
    %v93 = vld [vmem:[#allocation1] sm:$0xff]
    %v94 = vld [vmem:[#allocation1 + $0x9] sm:$0xff]
    %vm95 = vcmask 15360
    %v97 = vsel %vm95, %v83, 0
    %vm99 = vcmask 1040384
    %v100 = vsel %vm99, %v93, 0
    %v102 = vsel %vm99, %v94, 0
    %104 = vmatpush.bf16.msra.mxu0 0
    %105 = vmatpush.bf16.msra.mxu0 0
    %106 = vmatpush.bf16.msra.mxu0 0
    %107 = vmatpush.bf16.msra.mxu0 0
    %108 = vmatpush.bf16.msra.mxu0 0
    %109 = vmatpush.bf16.msra.mxu0 0
    %110 = vmatpush.bf16.msra.mxu0 0
    %111 = vmatpush.bf16.msra.mxu0 %v100
    %112 = vmatmul.bf16.gmra.mxu0 %v97
    %v113 = vpop.f32.mrf.mxu0
    %v114 = vadd.f32 %v87, %v113
    %v115 = vpop.f32.mrf.mxu0
    %116 = vdwg.mxu0
    %117 = vmatpush.bf16.msra.mxu0 0
    %118 = vmatpush.bf16.msra.mxu0 0
    %119 = vmatpush.bf16.msra.mxu0 0
    %120 = vmatpush.bf16.msra.mxu0 0
    %121 = vmatpush.bf16.msra.mxu0 0
    %122 = vmatpush.bf16.msra.mxu0 0
    %123 = vmatpush.bf16.msra.mxu0 0
    %124 = vmatpush.bf16.msra.mxu0 %v102
    %125 = vmatmul.bf16.gmra.mxu0 %v97
    %v126 = vpop.f32.mrf.mxu0
    %v127 = vadd.f32 %v88, %v126
    %v128 = vpop.f32.mrf.mxu0
    %129 = vdwg.mxu0
    %v130 = vpack.c.bf16 %v114, %v114
    %v131 = vpack.c.bf16 %v127, %v127
    %v132 = vld [vmem:[#allocation2] sm:$0xff]
    %v133 = vld [vmem:[#allocation2 + $0x8] sm:$0xff]
    %v134 = vld [vmem:[#allocation2 + $0x10] sm:$0xff]
    %v135 = vld [vmem:[#allocation2 + $0x18] sm:$0xff]
    %v136 = vld [vmem:[#allocation2 + $0x20] sm:$0xff]
    %v137 = vld [vmem:[#allocation2 + $0x28] sm:$0xff]
    %v138 = vld [vmem:[#allocation2 + $0x30] sm:$0xff]
    %v139 = vld [vmem:[#allocation2 + $0x38] sm:$0xff]
    %v140 = vld [vmem:[#allocation2 + $0x40] sm:$0xff]
    %v141 = vld [vmem:[#allocation2 + $0x48] sm:$0xff]
    %v142 = vld [vmem:[#allocation2 + $0x50] sm:$0xff]
    %v143 = vld [vmem:[#allocation2 + $0x58] sm:$0xff]
    %v144 = vld [vmem:[#allocation2 + $0x60] sm:$0xff]
    %v145 = vld [vmem:[#allocation2 + $0x68] sm:$0xff]
    %v146 = vld [vmem:[#allocation2 + $0x70] sm:$0xff]
    %v147 = vld [vmem:[#allocation2 + $0x78] sm:$0xff]
    %v148 = vld [vmem:[#allocation2 + $0x80] sm:$0xff]
    %v149 = vld [vmem:[#allocation2 + $0x88] sm:$0xff]
    %v150 = vld [vmem:[#allocation2 + $0x90] sm:$0xff]
    %v151 = vld [vmem:[#allocation2 + $0x98] sm:$0xff]
    %v152 = vld [vmem:[#allocation2 + $0xa0] sm:$0xff]
    %v153 = vld [vmem:[#allocation2 + $0xa8] sm:$0xff]
    %v154 = vld [vmem:[#allocation2 + $0xb0] sm:$0xff]
    %v155 = vld [vmem:[#allocation2 + $0xb8] sm:$0xff]
    %v156 = vld [vmem:[#allocation2 + $0xc0] sm:$0xff]
    %v157 = vld [vmem:[#allocation2 + $0xc8] sm:$0xff]
    %v158 = vld [vmem:[#allocation2 + $0xd0] sm:$0xff]
    %v159 = vld [vmem:[#allocation2 + $0xd8] sm:$0xff]
    %v160 = vld [vmem:[#allocation2 + $0xe0] sm:$0xff]
    %v161 = vld [vmem:[#allocation2 + $0xe8] sm:$0xff]
    %v162 = vld [vmem:[#allocation2 + $0xf0] sm:$0xff]
    %v163 = vld [vmem:[#allocation2 + $0xf8] sm:$0xff]
    %s164 = scalar_lea.vmem %s4, 2
    %v165 = vld [vmem:[%s164] sm:$0x3]
    %v167 = vperm.slane %v165, 0
    %v168 = vperm.slane %v165, 1
    %v203 = vunpack.c.l.b16 %v132
    %v204 = vunpack.c.h.b16 %v132
    %v205 = vunpack.c.l.b16 %v133
    %v206 = vunpack.c.h.b16 %v133
    %v207 = vunpack.c.l.b16 %v134
    %v208 = vunpack.c.h.b16 %v134
    %v209 = vunpack.c.l.b16 %v135
    %v210 = vunpack.c.h.b16 %v135
    %v211 = vunpack.c.l.b16 %v136
    %v212 = vunpack.c.h.b16 %v136
    %v213 = vunpack.c.l.b16 %v137
    %v214 = vunpack.c.h.b16 %v137
    %v215 = vunpack.c.l.b16 %v138
    %v216 = vunpack.c.h.b16 %v138
    %v217 = vunpack.c.l.b16 %v139
    %v218 = vunpack.c.h.b16 %v139
    %v219 = vunpack.c.l.b16 %v140
    %v220 = vunpack.c.h.b16 %v140
    %v221 = vunpack.c.l.b16 %v141
    %v222 = vunpack.c.h.b16 %v141
    %v223 = vunpack.c.l.b16 %v142
    %v224 = vunpack.c.h.b16 %v142
    %v225 = vunpack.c.l.b16 %v143
    %v226 = vunpack.c.h.b16 %v143
    %v227 = vunpack.c.l.b16 %v144
    %v228 = vunpack.c.h.b16 %v144
    %v229 = vunpack.c.l.b16 %v145
    %v230 = vunpack.c.h.b16 %v145
    %v231 = vunpack.c.l.b16 %v146
    %v232 = vunpack.c.h.b16 %v146
    %v233 = vunpack.c.l.b16 %v147
    %v234 = vunpack.c.h.b16 %v147
    %v235 = vunpack.c.l.b16 %v148
    %v236 = vunpack.c.h.b16 %v148
    %v237 = vunpack.c.l.b16 %v149
    %v238 = vunpack.c.h.b16 %v149
    %v239 = vunpack.c.l.b16 %v150
    %v240 = vunpack.c.h.b16 %v150
    %v241 = vunpack.c.l.b16 %v151
    %v242 = vunpack.c.h.b16 %v151
    %v243 = vunpack.c.l.b16 %v152
    %v244 = vunpack.c.h.b16 %v152
    %v245 = vunpack.c.l.b16 %v153
    %v246 = vunpack.c.h.b16 %v153
    %v247 = vunpack.c.l.b16 %v154
    %v248 = vunpack.c.h.b16 %v154
    %v249 = vunpack.c.l.b16 %v155
    %v250 = vunpack.c.h.b16 %v155
    %v251 = vunpack.c.l.b16 %v156
    %v252 = vunpack.c.h.b16 %v156
    %v253 = vunpack.c.l.b16 %v157
    %v254 = vunpack.c.h.b16 %v157
    %v255 = vunpack.c.l.b16 %v158
    %v256 = vunpack.c.h.b16 %v158
    %v257 = vunpack.c.l.b16 %v159
    %v258 = vunpack.c.h.b16 %v159
    %v259 = vunpack.c.l.b16 %v160
    %v260 = vunpack.c.h.b16 %v160
    %v261 = vunpack.c.l.b16 %v161
    %v262 = vunpack.c.h.b16 %v161
    %v263 = vunpack.c.l.b16 %v162
    %v264 = vunpack.c.h.b16 %v162
    %v265 = vunpack.c.l.b16 %v163
    %v266 = vunpack.c.h.b16 %v163
    %v267 = vpack.c.b16 %v205, %v203
    %v268 = vpack.c.b16 %v206, %v204
    %v269 = vpack.c.b16 %v209, %v207
    %v270 = vpack.c.b16 %v210, %v208
    %v271 = vpack.c.b16 %v213, %v211
    %v272 = vpack.c.b16 %v214, %v212
    %v273 = vpack.c.b16 %v217, %v215
    %v274 = vpack.c.b16 %v218, %v216
    %v275 = vpack.c.b16 %v221, %v219
    %v276 = vpack.c.b16 %v222, %v220
    %v277 = vpack.c.b16 %v225, %v223
    %v278 = vpack.c.b16 %v226, %v224
    %v279 = vpack.c.b16 %v229, %v227
    %v280 = vpack.c.b16 %v230, %v228
    %v281 = vpack.c.b16 %v233, %v231
    %v282 = vpack.c.b16 %v234, %v232
    %v283 = vpack.c.b16 %v237, %v235
    %v284 = vpack.c.b16 %v238, %v236
    %v285 = vpack.c.b16 %v241, %v239
    %v286 = vpack.c.b16 %v242, %v240
    %v287 = vpack.c.b16 %v245, %v243
    %v288 = vpack.c.b16 %v246, %v244
    %v289 = vpack.c.b16 %v249, %v247
    %v290 = vpack.c.b16 %v250, %v248
    %v291 = vpack.c.b16 %v253, %v251
    %v292 = vpack.c.b16 %v254, %v252
    %v293 = vpack.c.b16 %v257, %v255
    %v294 = vpack.c.b16 %v258, %v256
    %v295 = vpack.c.b16 %v261, %v259
    %v296 = vpack.c.b16 %v262, %v260
    %v297 = vpack.c.b16 %v265, %v263
    %v298 = vpack.c.b16 %v266, %v264
    %331 = vmatpush.bf16.msra.mxu0 %v281
    %332 = vmatpush.bf16.msra.mxu0 %v279
    %333 = vmatpush.bf16.msra.mxu0 %v277
    %334 = vmatpush.bf16.msra.mxu0 %v275
    %335 = vmatpush.bf16.msra.mxu0 %v273
    %336 = vmatpush.bf16.msra.mxu0 %v271
    %337 = vmatpush.bf16.msra.mxu0 %v269
    %338 = vmatpush.bf16.msra.mxu0 %v267
    %339 = vmatmul.bf16.gmra.mxu0 %v130
    %v340 = vpop.f32.mrf.mxu0
    %v341 = vadd.f32 %v167, %v340
    %v342 = vpop.f32.mrf.mxu0
    %343 = vdwg.mxu0
    %344 = vmatpush.bf16.msra.mxu0 %v297
    %345 = vmatpush.bf16.msra.mxu0 %v295
    %346 = vmatpush.bf16.msra.mxu0 %v293
    %347 = vmatpush.bf16.msra.mxu0 %v291
    %348 = vmatpush.bf16.msra.mxu0 %v289
    %349 = vmatpush.bf16.msra.mxu0 %v287
    %350 = vmatpush.bf16.msra.mxu0 %v285
    %351 = vmatpush.bf16.msra.mxu0 %v283
    %352 = vmatmul.bf16.gmra.mxu0 %v131
    %v353 = vpop.f32.mrf.mxu0
    %v354 = vadd.f32 %v341, %v353
    %v355 = vpop.f32.mrf.mxu0
    %356 = vdwg.mxu0
    %357 = vmatpush.bf16.msra.mxu0 %v282
    %358 = vmatpush.bf16.msra.mxu0 %v280
    %359 = vmatpush.bf16.msra.mxu0 %v278
    %360 = vmatpush.bf16.msra.mxu0 %v276
    %361 = vmatpush.bf16.msra.mxu0 %v274
    %362 = vmatpush.bf16.msra.mxu0 %v272
    %363 = vmatpush.bf16.msra.mxu0 %v270
    %364 = vmatpush.bf16.msra.mxu0 %v268
    %365 = vmatmul.bf16.gmra.mxu0 %v130
    %v366 = vpop.f32.mrf.mxu0
    %v367 = vadd.f32 %v168, %v366
    %v368 = vpop.f32.mrf.mxu0
    %369 = vdwg.mxu0
    %370 = vmatpush.bf16.msra.mxu0 %v298
    %371 = vmatpush.bf16.msra.mxu0 %v296
    %372 = vmatpush.bf16.msra.mxu0 %v294
    %373 = vmatpush.bf16.msra.mxu0 %v292
    %374 = vmatpush.bf16.msra.mxu0 %v290
    %375 = vmatpush.bf16.msra.mxu0 %v288
    %376 = vmatpush.bf16.msra.mxu0 %v286
    %377 = vmatpush.bf16.msra.mxu0 %v284
    %378 = vmatmul.bf16.gmra.mxu0 %v131
    %v379 = vpop.f32.mrf.mxu0
    %v380 = vadd.f32 %v367, %v379
    %v381 = vpop.f32.mrf.mxu0
    %382 = vdwg.mxu0
    %v383 = vpack.c.bf16 %v354, %v354
    %v384 = vpack.c.bf16 %v380, %v380
    %s385 = scalar_lea.vmem [#allocation2], 256
    %v386 = vld [vmem:[%s385] sm:$0xff]
    %v387 = vld [vmem:[%s385 + $0x8] sm:$0xff]
    %v388 = vld [vmem:[%s385 + $0x10] sm:$0xff]
    %v389 = vld [vmem:[%s385 + $0x18] sm:$0xff]
    %v390 = vld [vmem:[%s385 + $0x20] sm:$0xff]
    %v391 = vld [vmem:[%s385 + $0x28] sm:$0xff]
    %v392 = vld [vmem:[%s385 + $0x30] sm:$0xff]
    %v393 = vld [vmem:[%s385 + $0x38] sm:$0xff]
    %v394 = vld [vmem:[%s385 + $0x40] sm:$0xff]
    %v395 = vld [vmem:[%s385 + $0x48] sm:$0xff]
    %v396 = vld [vmem:[%s385 + $0x50] sm:$0xff]
    %v397 = vld [vmem:[%s385 + $0x58] sm:$0xff]
    %v398 = vld [vmem:[%s385 + $0x60] sm:$0xff]
    %v399 = vld [vmem:[%s385 + $0x68] sm:$0xff]
    %v400 = vld [vmem:[%s385 + $0x70] sm:$0xff]
    %v401 = vld [vmem:[%s385 + $0x78] sm:$0xff]
    %v402 = vld [vmem:[%s385 + $0x80] sm:$0xff]
    %v403 = vld [vmem:[%s385 + $0x88] sm:$0xff]
    %v404 = vld [vmem:[%s385 + $0x90] sm:$0xff]
    %v405 = vld [vmem:[%s385 + $0x98] sm:$0xff]
    %v406 = vld [vmem:[%s385 + $0xa0] sm:$0xff]
    %v407 = vld [vmem:[%s385 + $0xa8] sm:$0xff]
    %v408 = vld [vmem:[%s385 + $0xb0] sm:$0xff]
    %v409 = vld [vmem:[%s385 + $0xb8] sm:$0xff]
    %v410 = vld [vmem:[%s385 + $0xc0] sm:$0xff]
    %v411 = vld [vmem:[%s385 + $0xc8] sm:$0xff]
    %v412 = vld [vmem:[%s385 + $0xd0] sm:$0xff]
    %v413 = vld [vmem:[%s385 + $0xd8] sm:$0xff]
    %v414 = vld [vmem:[%s385 + $0xe0] sm:$0xff]
    %v415 = vld [vmem:[%s385 + $0xe8] sm:$0xff]
    %v416 = vld [vmem:[%s385 + $0xf0] sm:$0xff]
    %v417 = vld [vmem:[%s385 + $0xf8] sm:$0xff]
    %s418 = scalar_lea.vmem %s4, 4
    %v419 = vld [vmem:[%s418] sm:$0x3]
    %v421 = vperm.slane %v419, 0
    %v422 = vperm.slane %v419, 1
    %v457 = vunpack.c.l.b16 %v386
    %v458 = vunpack.c.h.b16 %v386
    %v459 = vunpack.c.l.b16 %v387
    %v460 = vunpack.c.h.b16 %v387
    %v461 = vunpack.c.l.b16 %v388
    %v462 = vunpack.c.h.b16 %v388
    %v463 = vunpack.c.l.b16 %v389
    %v464 = vunpack.c.h.b16 %v389
    %v465 = vunpack.c.l.b16 %v390
    %v466 = vunpack.c.h.b16 %v390
    %v467 = vunpack.c.l.b16 %v391
    %v468 = vunpack.c.h.b16 %v391
    %v469 = vunpack.c.l.b16 %v392
    %v470 = vunpack.c.h.b16 %v392
    %v471 = vunpack.c.l.b16 %v393
    %v472 = vunpack.c.h.b16 %v393
    %v473 = vunpack.c.l.b16 %v394
    %v474 = vunpack.c.h.b16 %v394
    %v475 = vunpack.c.l.b16 %v395
    %v476 = vunpack.c.h.b16 %v395
    %v477 = vunpack.c.l.b16 %v396
    %v478 = vunpack.c.h.b16 %v396
    %v479 = vunpack.c.l.b16 %v397
    %v480 = vunpack.c.h.b16 %v397
    %v481 = vunpack.c.l.b16 %v398
    %v482 = vunpack.c.h.b16 %v398
    %v483 = vunpack.c.l.b16 %v399
    %v484 = vunpack.c.h.b16 %v399
    %v485 = vunpack.c.l.b16 %v400
    %v486 = vunpack.c.h.b16 %v400
    %v487 = vunpack.c.l.b16 %v401
    %v488 = vunpack.c.h.b16 %v401
    %v489 = vunpack.c.l.b16 %v402
    %v490 = vunpack.c.h.b16 %v402
    %v491 = vunpack.c.l.b16 %v403
    %v492 = vunpack.c.h.b16 %v403
    %v493 = vunpack.c.l.b16 %v404
    %v494 = vunpack.c.h.b16 %v404
    %v495 = vunpack.c.l.b16 %v405
    %v496 = vunpack.c.h.b16 %v405
    %v497 = vunpack.c.l.b16 %v406
    %v498 = vunpack.c.h.b16 %v406
    %v499 = vunpack.c.l.b16 %v407
    %v500 = vunpack.c.h.b16 %v407
    %v501 = vunpack.c.l.b16 %v408
    %v502 = vunpack.c.h.b16 %v408
    %v503 = vunpack.c.l.b16 %v409
    %v504 = vunpack.c.h.b16 %v409
    %v505 = vunpack.c.l.b16 %v410
    %v506 = vunpack.c.h.b16 %v410
    %v507 = vunpack.c.l.b16 %v411
    %v508 = vunpack.c.h.b16 %v411
    %v509 = vunpack.c.l.b16 %v412
    %v510 = vunpack.c.h.b16 %v412
    %v511 = vunpack.c.l.b16 %v413
    %v512 = vunpack.c.h.b16 %v413
    %v513 = vunpack.c.l.b16 %v414
    %v514 = vunpack.c.h.b16 %v414
    %v515 = vunpack.c.l.b16 %v415
    %v516 = vunpack.c.h.b16 %v415
    %v517 = vunpack.c.l.b16 %v416
    %v518 = vunpack.c.h.b16 %v416
    %v519 = vunpack.c.l.b16 %v417
    %v520 = vunpack.c.h.b16 %v417
    %v521 = vpack.c.b16 %v459, %v457
    %v522 = vpack.c.b16 %v460, %v458
    %v523 = vpack.c.b16 %v463, %v461
    %v524 = vpack.c.b16 %v464, %v462
    %v525 = vpack.c.b16 %v467, %v465
    %v526 = vpack.c.b16 %v468, %v466
    %v527 = vpack.c.b16 %v471, %v469
    %v528 = vpack.c.b16 %v472, %v470
    %v529 = vpack.c.b16 %v475, %v473
    %v530 = vpack.c.b16 %v476, %v474
    %v531 = vpack.c.b16 %v479, %v477
    %v532 = vpack.c.b16 %v480, %v478
    %v533 = vpack.c.b16 %v483, %v481
    %v534 = vpack.c.b16 %v484, %v482
    %v535 = vpack.c.b16 %v487, %v485
    %v536 = vpack.c.b16 %v488, %v486
    %v537 = vpack.c.b16 %v491, %v489
    %v538 = vpack.c.b16 %v492, %v490
    %v539 = vpack.c.b16 %v495, %v493
    %v540 = vpack.c.b16 %v496, %v494
    %v541 = vpack.c.b16 %v499, %v497
    %v542 = vpack.c.b16 %v500, %v498
    %v543 = vpack.c.b16 %v503, %v501
    %v544 = vpack.c.b16 %v504, %v502
    %v545 = vpack.c.b16 %v507, %v505
    %v546 = vpack.c.b16 %v508, %v506
    %v547 = vpack.c.b16 %v511, %v509
    %v548 = vpack.c.b16 %v512, %v510
    %v549 = vpack.c.b16 %v515, %v513
    %v550 = vpack.c.b16 %v516, %v514
    %v551 = vpack.c.b16 %v519, %v517
    %v552 = vpack.c.b16 %v520, %v518
    %585 = vmatpush.bf16.msra.mxu0 %v535
    %586 = vmatpush.bf16.msra.mxu0 %v533
    %587 = vmatpush.bf16.msra.mxu0 %v531
    %588 = vmatpush.bf16.msra.mxu0 %v529
    %589 = vmatpush.bf16.msra.mxu0 %v527
    %590 = vmatpush.bf16.msra.mxu0 %v525
    %591 = vmatpush.bf16.msra.mxu0 %v523
    %592 = vmatpush.bf16.msra.mxu0 %v521
    %593 = vmatmul.bf16.gmra.mxu0 %v383
    %v594 = vpop.f32.mrf.mxu0
    %v595 = vadd.f32 %v421, %v594
    %v596 = vpop.f32.mrf.mxu0
    %597 = vdwg.mxu0
    %598 = vmatpush.bf16.msra.mxu0 %v551
    %599 = vmatpush.bf16.msra.mxu0 %v549
    %600 = vmatpush.bf16.msra.mxu0 %v547
    %601 = vmatpush.bf16.msra.mxu0 %v545
    %602 = vmatpush.bf16.msra.mxu0 %v543
    %603 = vmatpush.bf16.msra.mxu0 %v541
    %604 = vmatpush.bf16.msra.mxu0 %v539
    %605 = vmatpush.bf16.msra.mxu0 %v537
    %606 = vmatmul.bf16.gmra.mxu0 %v384
    %v607 = vpop.f32.mrf.mxu0
    %v608 = vadd.f32 %v595, %v607
    %v609 = vpop.f32.mrf.mxu0
    %610 = vdwg.mxu0
    %611 = vmatpush.bf16.msra.mxu0 %v536
    %612 = vmatpush.bf16.msra.mxu0 %v534
    %613 = vmatpush.bf16.msra.mxu0 %v532
    %614 = vmatpush.bf16.msra.mxu0 %v530
    %615 = vmatpush.bf16.msra.mxu0 %v528
    %616 = vmatpush.bf16.msra.mxu0 %v526
    %617 = vmatpush.bf16.msra.mxu0 %v524
    %618 = vmatpush.bf16.msra.mxu0 %v522
    %619 = vmatmul.bf16.gmra.mxu0 %v383
    %v620 = vpop.f32.mrf.mxu0
    %v621 = vadd.f32 %v422, %v620
    %v622 = vpop.f32.mrf.mxu0
    %623 = vdwg.mxu0
    %624 = vmatpush.bf16.msra.mxu0 %v552
    %625 = vmatpush.bf16.msra.mxu0 %v550
    %626 = vmatpush.bf16.msra.mxu0 %v548
    %627 = vmatpush.bf16.msra.mxu0 %v546
    %628 = vmatpush.bf16.msra.mxu0 %v544
    %629 = vmatpush.bf16.msra.mxu0 %v542
    %630 = vmatpush.bf16.msra.mxu0 %v540
    %631 = vmatpush.bf16.msra.mxu0 %v538
    %632 = vmatmul.bf16.gmra.mxu0 %v384
    %v633 = vpop.f32.mrf.mxu0
    %v634 = vadd.f32 %v621, %v633
    %v635 = vpop.f32.mrf.mxu0
    %636 = vdwg.mxu0
    %v637 = vpack.c.bf16 %v608, %v608
    %v638 = vpack.c.bf16 %v634, %v634
    %s639 = scalar_lea.vmem [#allocation2], 512
    %v640 = vld [vmem:[%s639] sm:$0xff]
    %v641 = vld [vmem:[%s639 + $0x8] sm:$0xff]
    %v642 = vld [vmem:[%s639 + $0x10] sm:$0xff]
    %v643 = vld [vmem:[%s639 + $0x18] sm:$0xff]
    %v644 = vld [vmem:[%s639 + $0x20] sm:$0xff]
    %v645 = vld [vmem:[%s639 + $0x28] sm:$0xff]
    %v646 = vld [vmem:[%s639 + $0x30] sm:$0xff]
    %v647 = vld [vmem:[%s639 + $0x38] sm:$0xff]
    %v648 = vld [vmem:[%s639 + $0x40] sm:$0xff]
    %v649 = vld [vmem:[%s639 + $0x48] sm:$0xff]
    %v650 = vld [vmem:[%s639 + $0x50] sm:$0xff]
    %v651 = vld [vmem:[%s639 + $0x58] sm:$0xff]
    %v652 = vld [vmem:[%s639 + $0x60] sm:$0xff]
    %v653 = vld [vmem:[%s639 + $0x68] sm:$0xff]
    %v654 = vld [vmem:[%s639 + $0x70] sm:$0xff]
    %v655 = vld [vmem:[%s639 + $0x78] sm:$0xff]
    %v656 = vld [vmem:[%s639 + $0x80] sm:$0xff]
    %v657 = vld [vmem:[%s639 + $0x88] sm:$0xff]
    %v658 = vld [vmem:[%s639 + $0x90] sm:$0xff]
    %v659 = vld [vmem:[%s639 + $0x98] sm:$0xff]
    %v660 = vld [vmem:[%s639 + $0xa0] sm:$0xff]
    %v661 = vld [vmem:[%s639 + $0xa8] sm:$0xff]
    %v662 = vld [vmem:[%s639 + $0xb0] sm:$0xff]
    %v663 = vld [vmem:[%s639 + $0xb8] sm:$0xff]
    %v664 = vld [vmem:[%s639 + $0xc0] sm:$0xff]
    %v665 = vld [vmem:[%s639 + $0xc8] sm:$0xff]
    %v666 = vld [vmem:[%s639 + $0xd0] sm:$0xff]
    %v667 = vld [vmem:[%s639 + $0xd8] sm:$0xff]
    %v668 = vld [vmem:[%s639 + $0xe0] sm:$0xff]
    %v669 = vld [vmem:[%s639 + $0xe8] sm:$0xff]
    %v670 = vld [vmem:[%s639 + $0xf0] sm:$0xff]
    %v671 = vld [vmem:[%s639 + $0xf8] sm:$0xff]
    %s672 = scalar_lea.vmem %s4, 6
    %v673 = vld [vmem:[%s672] sm:$0x3]
    %v675 = vperm.slane %v673, 0
    %v676 = vperm.slane %v673, 1
    %v711 = vunpack.c.l.b16 %v640
    %v712 = vunpack.c.h.b16 %v640
    %v713 = vunpack.c.l.b16 %v641
    %v714 = vunpack.c.h.b16 %v641
    %v715 = vunpack.c.l.b16 %v642
    %v716 = vunpack.c.h.b16 %v642
    %v717 = vunpack.c.l.b16 %v643
    %v718 = vunpack.c.h.b16 %v643
    %v719 = vunpack.c.l.b16 %v644
    %v720 = vunpack.c.h.b16 %v644
    %v721 = vunpack.c.l.b16 %v645
    %v722 = vunpack.c.h.b16 %v645
    %v723 = vunpack.c.l.b16 %v646
    %v724 = vunpack.c.h.b16 %v646
    %v725 = vunpack.c.l.b16 %v647
    %v726 = vunpack.c.h.b16 %v647
    %v727 = vunpack.c.l.b16 %v648
    %v728 = vunpack.c.h.b16 %v648
    %v729 = vunpack.c.l.b16 %v649
    %v730 = vunpack.c.h.b16 %v649
    %v731 = vunpack.c.l.b16 %v650
    %v732 = vunpack.c.h.b16 %v650
    %v733 = vunpack.c.l.b16 %v651
    %v734 = vunpack.c.h.b16 %v651
    %v735 = vunpack.c.l.b16 %v652
    %v736 = vunpack.c.h.b16 %v652
    %v737 = vunpack.c.l.b16 %v653
    %v738 = vunpack.c.h.b16 %v653
    %v739 = vunpack.c.l.b16 %v654
    %v740 = vunpack.c.h.b16 %v654
    %v741 = vunpack.c.l.b16 %v655
    %v742 = vunpack.c.h.b16 %v655
    %v743 = vunpack.c.l.b16 %v656
    %v744 = vunpack.c.h.b16 %v656
    %v745 = vunpack.c.l.b16 %v657
    %v746 = vunpack.c.h.b16 %v657
    %v747 = vunpack.c.l.b16 %v658
    %v748 = vunpack.c.h.b16 %v658
    %v749 = vunpack.c.l.b16 %v659
    %v750 = vunpack.c.h.b16 %v659
    %v751 = vunpack.c.l.b16 %v660
    %v752 = vunpack.c.h.b16 %v660
    %v753 = vunpack.c.l.b16 %v661
    %v754 = vunpack.c.h.b16 %v661
    %v755 = vunpack.c.l.b16 %v662
    %v756 = vunpack.c.h.b16 %v662
    %v757 = vunpack.c.l.b16 %v663
    %v758 = vunpack.c.h.b16 %v663
    %v759 = vunpack.c.l.b16 %v664
    %v760 = vunpack.c.h.b16 %v664
    %v761 = vunpack.c.l.b16 %v665
    %v762 = vunpack.c.h.b16 %v665
    %v763 = vunpack.c.l.b16 %v666
    %v764 = vunpack.c.h.b16 %v666
    %v765 = vunpack.c.l.b16 %v667
    %v766 = vunpack.c.h.b16 %v667
    %v767 = vunpack.c.l.b16 %v668
    %v768 = vunpack.c.h.b16 %v668
    %v769 = vunpack.c.l.b16 %v669
    %v770 = vunpack.c.h.b16 %v669
    %v771 = vunpack.c.l.b16 %v670
    %v772 = vunpack.c.h.b16 %v670
    %v773 = vunpack.c.l.b16 %v671
    %v774 = vunpack.c.h.b16 %v671
    %v775 = vpack.c.b16 %v713, %v711
    %v776 = vpack.c.b16 %v714, %v712
    %v777 = vpack.c.b16 %v717, %v715
    %v778 = vpack.c.b16 %v718, %v716
    %v779 = vpack.c.b16 %v721, %v719
    %v780 = vpack.c.b16 %v722, %v720
    %v781 = vpack.c.b16 %v725, %v723
    %v782 = vpack.c.b16 %v726, %v724
    %v783 = vpack.c.b16 %v729, %v727
    %v784 = vpack.c.b16 %v730, %v728
    %v785 = vpack.c.b16 %v733, %v731
    %v786 = vpack.c.b16 %v734, %v732
    %v787 = vpack.c.b16 %v737, %v735
    %v788 = vpack.c.b16 %v738, %v736
    %v789 = vpack.c.b16 %v741, %v739
    %v790 = vpack.c.b16 %v742, %v740
    %v791 = vpack.c.b16 %v745, %v743
    %v792 = vpack.c.b16 %v746, %v744
    %v793 = vpack.c.b16 %v749, %v747
    %v794 = vpack.c.b16 %v750, %v748
    %v795 = vpack.c.b16 %v753, %v751
    %v796 = vpack.c.b16 %v754, %v752
    %v797 = vpack.c.b16 %v757, %v755
    %v798 = vpack.c.b16 %v758, %v756
    %v799 = vpack.c.b16 %v761, %v759
    %v800 = vpack.c.b16 %v762, %v760
    %v801 = vpack.c.b16 %v765, %v763
    %v802 = vpack.c.b16 %v766, %v764
    %v803 = vpack.c.b16 %v769, %v767
    %v804 = vpack.c.b16 %v770, %v768
    %v805 = vpack.c.b16 %v773, %v771
    %v806 = vpack.c.b16 %v774, %v772
    %839 = vmatpush.bf16.msra.mxu0 %v789
    %840 = vmatpush.bf16.msra.mxu0 %v787
    %841 = vmatpush.bf16.msra.mxu0 %v785
    %842 = vmatpush.bf16.msra.mxu0 %v783
    %843 = vmatpush.bf16.msra.mxu0 %v781
    %844 = vmatpush.bf16.msra.mxu0 %v779
    %845 = vmatpush.bf16.msra.mxu0 %v777
    %846 = vmatpush.bf16.msra.mxu0 %v775
    %847 = vmatmul.bf16.gmra.mxu0 %v637
    %v848 = vpop.f32.mrf.mxu0
    %v849 = vadd.f32 %v675, %v848
    %v850 = vpop.f32.mrf.mxu0
    %851 = vdwg.mxu0
    %852 = vmatpush.bf16.msra.mxu0 %v805
    %853 = vmatpush.bf16.msra.mxu0 %v803
    %854 = vmatpush.bf16.msra.mxu0 %v801
    %855 = vmatpush.bf16.msra.mxu0 %v799
    %856 = vmatpush.bf16.msra.mxu0 %v797
    %857 = vmatpush.bf16.msra.mxu0 %v795
    %858 = vmatpush.bf16.msra.mxu0 %v793
    %859 = vmatpush.bf16.msra.mxu0 %v791
    %860 = vmatmul.bf16.gmra.mxu0 %v638
    %v861 = vpop.f32.mrf.mxu0
    %v862 = vadd.f32 %v849, %v861
    %v863 = vpop.f32.mrf.mxu0
    %864 = vdwg.mxu0
    %865 = vmatpush.bf16.msra.mxu0 %v790
    %866 = vmatpush.bf16.msra.mxu0 %v788
    %867 = vmatpush.bf16.msra.mxu0 %v786
    %868 = vmatpush.bf16.msra.mxu0 %v784
    %869 = vmatpush.bf16.msra.mxu0 %v782
    %870 = vmatpush.bf16.msra.mxu0 %v780
    %871 = vmatpush.bf16.msra.mxu0 %v778
    %872 = vmatpush.bf16.msra.mxu0 %v776
    %873 = vmatmul.bf16.gmra.mxu0 %v637
    %v874 = vpop.f32.mrf.mxu0
    %v875 = vadd.f32 %v676, %v874
    %v876 = vpop.f32.mrf.mxu0
    %877 = vdwg.mxu0
    %878 = vmatpush.bf16.msra.mxu0 %v806
    %879 = vmatpush.bf16.msra.mxu0 %v804
    %880 = vmatpush.bf16.msra.mxu0 %v802
    %881 = vmatpush.bf16.msra.mxu0 %v800
    %882 = vmatpush.bf16.msra.mxu0 %v798
    %883 = vmatpush.bf16.msra.mxu0 %v796
    %884 = vmatpush.bf16.msra.mxu0 %v794
    %885 = vmatpush.bf16.msra.mxu0 %v792
    %886 = vmatmul.bf16.gmra.mxu0 %v638
    %v887 = vpop.f32.mrf.mxu0
    %v888 = vadd.f32 %v875, %v887
    %v889 = vpop.f32.mrf.mxu0
    %890 = vdwg.mxu0
    %v891 = vpack.c.bf16 %v862, %v862
    %v892 = vpack.c.bf16 %v888, %v888
    %v893 = vld [vmem:[%s5] sm:$0xf]
    %v894 = vld [vmem:[%s5 + $0x4] sm:$0xf]
    %v895 = vld [vmem:[%s5 + $0x8] sm:$0xf]
    %v896 = vld [vmem:[%s5 + $0xc] sm:$0xf]
    %v897 = vld [vmem:[%s5 + $0x10] sm:$0xf]
    %v898 = vld [vmem:[%s5 + $0x14] sm:$0xf]
    %v899 = vld [vmem:[%s5 + $0x18] sm:$0xf]
    %v900 = vld [vmem:[%s5 + $0x1c] sm:$0xf]
    %v901 = vld [vmem:[%s5 + $0x20] sm:$0xf]
    %v902 = vld [vmem:[%s5 + $0x24] sm:$0xf]
    %v903 = vld [vmem:[%s5 + $0x28] sm:$0xf]
    %v904 = vld [vmem:[%s5 + $0x2c] sm:$0xf]
    %v905 = vld [vmem:[%s5 + $0x30] sm:$0xf]
    %v906 = vld [vmem:[%s5 + $0x34] sm:$0xf]
    %v907 = vld [vmem:[%s5 + $0x38] sm:$0xf]
    %v908 = vld [vmem:[%s5 + $0x3c] sm:$0xf]
    %v909 = vld [vmem:[%s5 + $0x40] sm:$0xf]
    %v910 = vld [vmem:[%s5 + $0x44] sm:$0xf]
    %v911 = vld [vmem:[%s5 + $0x48] sm:$0xf]
    %v912 = vld [vmem:[%s5 + $0x4c] sm:$0xf]
    %v913 = vld [vmem:[%s5 + $0x50] sm:$0xf]
    %v914 = vld [vmem:[%s5 + $0x54] sm:$0xf]
    %v915 = vld [vmem:[%s5 + $0x58] sm:$0xf]
    %v916 = vld [vmem:[%s5 + $0x5c] sm:$0xf]
    %v917 = vld [vmem:[%s5 + $0x60] sm:$0xf]
    %v918 = vld [vmem:[%s5 + $0x64] sm:$0xf]
    %v919 = vld [vmem:[%s5 + $0x68] sm:$0xf]
    %v920 = vld [vmem:[%s5 + $0x6c] sm:$0xf]
    %v921 = vld [vmem:[%s5 + $0x70] sm:$0xf]
    %v922 = vld [vmem:[%s5 + $0x74] sm:$0xf]
    %v923 = vld [vmem:[%s5 + $0x78] sm:$0xf]
    %v924 = vld [vmem:[%s5 + $0x7c] sm:$0xf]
    %v925 = vld [vmem:[%s6] sm:$0x1]
    %v927 = vperm.slane %v925, 0
    %v961 = vunpack.c.l.b16 %v893
    %v962 = vunpack.c.l.b16 %v894
    %v963 = vunpack.c.l.b16 %v895
    %v964 = vunpack.c.l.b16 %v896
    %v965 = vunpack.c.l.b16 %v897
    %v966 = vunpack.c.l.b16 %v898
    %v967 = vunpack.c.l.b16 %v899
    %v968 = vunpack.c.l.b16 %v900
    %v969 = vunpack.c.l.b16 %v901
    %v970 = vunpack.c.l.b16 %v902
    %v971 = vunpack.c.l.b16 %v903
    %v972 = vunpack.c.l.b16 %v904
    %v973 = vunpack.c.l.b16 %v905
    %v974 = vunpack.c.l.b16 %v906
    %v975 = vunpack.c.l.b16 %v907
    %v976 = vunpack.c.l.b16 %v908
    %v977 = vunpack.c.l.b16 %v909
    %v978 = vunpack.c.l.b16 %v910
    %v979 = vunpack.c.l.b16 %v911
    %v980 = vunpack.c.l.b16 %v912
    %v981 = vunpack.c.l.b16 %v913
    %v982 = vunpack.c.l.b16 %v914
    %v983 = vunpack.c.l.b16 %v915
    %v984 = vunpack.c.l.b16 %v916
    %v985 = vunpack.c.l.b16 %v917
    %v986 = vunpack.c.l.b16 %v918
    %v987 = vunpack.c.l.b16 %v919
    %v988 = vunpack.c.l.b16 %v920
    %v989 = vunpack.c.l.b16 %v921
    %v990 = vunpack.c.l.b16 %v922
    %v991 = vunpack.c.l.b16 %v923
    %v992 = vunpack.c.l.b16 %v924
    %v993 = vpack.c.b16 %v962, %v961
    %v994 = vpack.c.b16 %v964, %v963
    %v995 = vpack.c.b16 %v966, %v965
    %v996 = vpack.c.b16 %v968, %v967
    %v997 = vpack.c.b16 %v970, %v969
    %v998 = vpack.c.b16 %v972, %v971
    %v999 = vpack.c.b16 %v974, %v973
    %v1000 = vpack.c.b16 %v976, %v975
    %v1001 = vpack.c.b16 %v978, %v977
    %v1002 = vpack.c.b16 %v980, %v979
    %v1003 = vpack.c.b16 %v982, %v981
    %v1004 = vpack.c.b16 %v984, %v983
    %v1005 = vpack.c.b16 %v986, %v985
    %v1006 = vpack.c.b16 %v988, %v987
    %v1007 = vpack.c.b16 %v990, %v989
    %v1008 = vpack.c.b16 %v992, %v991
    %1025 = vmatpush.bf16.msra.mxu0 %v1000
    %1026 = vmatpush.bf16.msra.mxu0 %v999
    %1027 = vmatpush.bf16.msra.mxu0 %v998
    %1028 = vmatpush.bf16.msra.mxu0 %v997
    %1029 = vmatpush.bf16.msra.mxu0 %v996
    %1030 = vmatpush.bf16.msra.mxu0 %v995
    %1031 = vmatpush.bf16.msra.mxu0 %v994
    %1032 = vmatpush.bf16.msra.mxu0 %v993
    %1033 = vmatmul.bf16.gmra.mxu0 %v891
    %v1034 = vpop.f32.mrf.mxu0
    %v1035 = vadd.f32 %v927, %v1034
    %v1036 = vpop.f32.mrf.mxu0
    %1037 = vdwg.mxu0
    %1038 = vmatpush.bf16.msra.mxu0 %v1008
    %1039 = vmatpush.bf16.msra.mxu0 %v1007
    %1040 = vmatpush.bf16.msra.mxu0 %v1006
    %1041 = vmatpush.bf16.msra.mxu0 %v1005
    %1042 = vmatpush.bf16.msra.mxu0 %v1004
    %1043 = vmatpush.bf16.msra.mxu0 %v1003
    %1044 = vmatpush.bf16.msra.mxu0 %v1002
    %1045 = vmatpush.bf16.msra.mxu0 %v1001
    %1046 = vmatmul.bf16.gmra.mxu0 %v892
    %v1047 = vpop.f32.mrf.mxu0
    %v1048 = vadd.f32 %v1035, %v1047
    %v1049 = vpop.f32.mrf.mxu0
    %1050 = vdwg.mxu0
    %v1052 = vperm.slane %v78, 0
    %v1054 = vmul.f32 %v1048, %v1052
    %p1055 = scmp.eq.s32.totalorder 0, 0
    // Predicated region
    $region58: #{tpu_custom_call.1} parent=1 // pred_check
      %p1056 = pneg %p1055
    $region59: #{tpu_custom_call.1} parent=1 // pred_check_branch
      %1058 = sbr.rel (%p1056) target = $region61
    $region60: #{tpu_custom_call.1} parent=1 // pred_region
      %vm1059 = vcmask 7168
      %1060 = vst.msk [vmem:[%s13] sm:$0xff] %vm1059, 0.0
      %v1061 = vld [vmem:[%s7] sm:$0x3]
      %v1062 = vld [vmem:[%s9] sm:$0x3]
      %v1064 = vperm.slane %v1062, 0
      %v1065 = vperm.slane %v1062, 1
      %1069 = vst [vmem:[#allocation1] ss:$9 sm:$0xff] %v1061
      %v1070 = vld [vmem:[#allocation1] sm:$0xff]
      %v1071 = vld [vmem:[#allocation1 + $0x9] sm:$0xff]
      %v1072 = vsel %vm99, %v1070, 0
      %v1074 = vsel %vm99, %v1071, 0
      %1076 = vmatpush.bf16.msra.mxu0 0
      %1077 = vmatpush.bf16.msra.mxu0 0
      %1078 = vmatpush.bf16.msra.mxu0 0
      %1079 = vmatpush.bf16.msra.mxu0 0
      %1080 = vmatpush.bf16.msra.mxu0 0
      %1081 = vmatpush.bf16.msra.mxu0 0
      %1082 = vmatpush.bf16.msra.mxu0 0
      %1083 = vmatpush.bf16.msra.mxu0 %v1072
      %1084 = vmatmul.bf16.gmra.mxu0 %v97
      %v1085 = vpop.f32.mrf.mxu0
      %v1086 = vadd.f32 %v1064, %v1085
      %v1087 = vpop.f32.mrf.mxu0
      %1088 = vdwg.mxu0
      %1089 = vmatpush.bf16.msra.mxu0 0
      %1090 = vmatpush.bf16.msra.mxu0 0
      %1091 = vmatpush.bf16.msra.mxu0 0
      %1092 = vmatpush.bf16.msra.mxu0 0
      %1093 = vmatpush.bf16.msra.mxu0 0
      %1094 = vmatpush.bf16.msra.mxu0 0
      %1095 = vmatpush.bf16.msra.mxu0 0
      %1096 = vmatpush.bf16.msra.mxu0 %v1074
      %1097 = vmatmul.bf16.gmra.mxu0 %v97
      %v1098 = vpop.f32.mrf.mxu0
      %v1099 = vadd.f32 %v1065, %v1098
      %v1100 = vpop.f32.mrf.mxu0
      %1101 = vdwg.mxu0
      %v1102 = vpack.c.bf16 %v1086, %v1086
      %v1103 = vpack.c.bf16 %v1099, %v1099
      %v1104 = vld [vmem:[#allocation4] sm:$0xff]
      %v1105 = vld [vmem:[#allocation4 + $0x8] sm:$0xff]
      %v1106 = vld [vmem:[#allocation4 + $0x10] sm:$0xff]
      %v1107 = vld [vmem:[#allocation4 + $0x18] sm:$0xff]
      %v1108 = vld [vmem:[#allocation4 + $0x20] sm:$0xff]
      %v1109 = vld [vmem:[#allocation4 + $0x28] sm:$0xff]
      %v1110 = vld [vmem:[#allocation4 + $0x30] sm:$0xff]
      %v1111 = vld [vmem:[#allocation4 + $0x38] sm:$0xff]
      %v1112 = vld [vmem:[#allocation4 + $0x40] sm:$0xff]
      %v1113 = vld [vmem:[#allocation4 + $0x48] sm:$0xff]
      %v1114 = vld [vmem:[#allocation4 + $0x50] sm:$0xff]
      %v1115 = vld [vmem:[#allocation4 + $0x58] sm:$0xff]
      %v1116 = vld [vmem:[#allocation4 + $0x60] sm:$0xff]
      %v1117 = vld [vmem:[#allocation4 + $0x68] sm:$0xff]
      %v1118 = vld [vmem:[#allocation4 + $0x70] sm:$0xff]
      %v1119 = vld [vmem:[#allocation4 + $0x78] sm:$0xff]
      %v1120 = vld [vmem:[#allocation4 + $0x80] sm:$0xff]
      %v1121 = vld [vmem:[#allocation4 + $0x88] sm:$0xff]
      %v1122 = vld [vmem:[#allocation4 + $0x90] sm:$0xff]
      %v1123 = vld [vmem:[#allocation4 + $0x98] sm:$0xff]
      %v1124 = vld [vmem:[#allocation4 + $0xa0] sm:$0xff]
      %v1125 = vld [vmem:[#allocation4 + $0xa8] sm:$0xff]
      %v1126 = vld [vmem:[#allocation4 + $0xb0] sm:$0xff]
      %v1127 = vld [vmem:[#allocation4 + $0xb8] sm:$0xff]
      %v1128 = vld [vmem:[#allocation4 + $0xc0] sm:$0xff]
      %v1129 = vld [vmem:[#allocation4 + $0xc8] sm:$0xff]
      %v1130 = vld [vmem:[#allocation4 + $0xd0] sm:$0xff]
      %v1131 = vld [vmem:[#allocation4 + $0xd8] sm:$0xff]
      %v1132 = vld [vmem:[#allocation4 + $0xe0] sm:$0xff]
      %v1133 = vld [vmem:[#allocation4 + $0xe8] sm:$0xff]
      %v1134 = vld [vmem:[#allocation4 + $0xf0] sm:$0xff]
      %v1135 = vld [vmem:[#allocation4 + $0xf8] sm:$0xff]
      %s1136 = scalar_lea.vmem %s9, 2
      %v1137 = vld [vmem:[%s1136] sm:$0x3]
      %v1139 = vperm.slane %v1137, 0
      %v1140 = vperm.slane %v1137, 1
      %v1175 = vunpack.c.l.b16 %v1104
      %v1176 = vunpack.c.h.b16 %v1104
      %v1177 = vunpack.c.l.b16 %v1105
      %v1178 = vunpack.c.h.b16 %v1105
      %v1179 = vunpack.c.l.b16 %v1106
      %v1180 = vunpack.c.h.b16 %v1106
      %v1181 = vunpack.c.l.b16 %v1107
      %v1182 = vunpack.c.h.b16 %v1107
      %v1183 = vunpack.c.l.b16 %v1108
      %v1184 = vunpack.c.h.b16 %v1108
      %v1185 = vunpack.c.l.b16 %v1109
      %v1186 = vunpack.c.h.b16 %v1109
      %v1187 = vunpack.c.l.b16 %v1110
      %v1188 = vunpack.c.h.b16 %v1110
      %v1189 = vunpack.c.l.b16 %v1111
      %v1190 = vunpack.c.h.b16 %v1111
      %v1191 = vunpack.c.l.b16 %v1112
      %v1192 = vunpack.c.h.b16 %v1112
      %v1193 = vunpack.c.l.b16 %v1113
      %v1194 = vunpack.c.h.b16 %v1113
      %v1195 = vunpack.c.l.b16 %v1114
      %v1196 = vunpack.c.h.b16 %v1114
      %v1197 = vunpack.c.l.b16 %v1115
      %v1198 = vunpack.c.h.b16 %v1115
      %v1199 = vunpack.c.l.b16 %v1116
      %v1200 = vunpack.c.h.b16 %v1116
      %v1201 = vunpack.c.l.b16 %v1117
      %v1202 = vunpack.c.h.b16 %v1117
      %v1203 = vunpack.c.l.b16 %v1118
      %v1204 = vunpack.c.h.b16 %v1118
      %v1205 = vunpack.c.l.b16 %v1119
      %v1206 = vunpack.c.h.b16 %v1119
      %v1207 = vunpack.c.l.b16 %v1120
      %v1208 = vunpack.c.h.b16 %v1120
      %v1209 = vunpack.c.l.b16 %v1121
      %v1210 = vunpack.c.h.b16 %v1121
      %v1211 = vunpack.c.l.b16 %v1122
      %v1212 = vunpack.c.h.b16 %v1122
      %v1213 = vunpack.c.l.b16 %v1123
      %v1214 = vunpack.c.h.b16 %v1123
      %v1215 = vunpack.c.l.b16 %v1124
      %v1216 = vunpack.c.h.b16 %v1124
      %v1217 = vunpack.c.l.b16 %v1125
      %v1218 = vunpack.c.h.b16 %v1125
      %v1219 = vunpack.c.l.b16 %v1126
      %v1220 = vunpack.c.h.b16 %v1126
      %v1221 = vunpack.c.l.b16 %v1127
      %v1222 = vunpack.c.h.b16 %v1127
      %v1223 = vunpack.c.l.b16 %v1128
      %v1224 = vunpack.c.h.b16 %v1128
      %v1225 = vunpack.c.l.b16 %v1129
      %v1226 = vunpack.c.h.b16 %v1129
      %v1227 = vunpack.c.l.b16 %v1130
      %v1228 = vunpack.c.h.b16 %v1130
      %v1229 = vunpack.c.l.b16 %v1131
      %v1230 = vunpack.c.h.b16 %v1131
      %v1231 = vunpack.c.l.b16 %v1132
      %v1232 = vunpack.c.h.b16 %v1132
      %v1233 = vunpack.c.l.b16 %v1133
      %v1234 = vunpack.c.h.b16 %v1133
      %v1235 = vunpack.c.l.b16 %v1134
      %v1236 = vunpack.c.h.b16 %v1134
      %v1237 = vunpack.c.l.b16 %v1135
      %v1238 = vunpack.c.h.b16 %v1135
      %v1239 = vpack.c.b16 %v1177, %v1175
      %v1240 = vpack.c.b16 %v1178, %v1176
      %v1241 = vpack.c.b16 %v1181, %v1179
      %v1242 = vpack.c.b16 %v1182, %v1180
      %v1243 = vpack.c.b16 %v1185, %v1183
      %v1244 = vpack.c.b16 %v1186, %v1184
      %v1245 = vpack.c.b16 %v1189, %v1187
      %v1246 = vpack.c.b16 %v1190, %v1188
      %v1247 = vpack.c.b16 %v1193, %v1191
      %v1248 = vpack.c.b16 %v1194, %v1192
      %v1249 = vpack.c.b16 %v1197, %v1195
      %v1250 = vpack.c.b16 %v1198, %v1196
      %v1251 = vpack.c.b16 %v1201, %v1199
      %v1252 = vpack.c.b16 %v1202, %v1200
      %v1253 = vpack.c.b16 %v1205, %v1203
      %v1254 = vpack.c.b16 %v1206, %v1204
      %v1255 = vpack.c.b16 %v1209, %v1207
      %v1256 = vpack.c.b16 %v1210, %v1208
      %v1257 = vpack.c.b16 %v1213, %v1211
      %v1258 = vpack.c.b16 %v1214, %v1212
      %v1259 = vpack.c.b16 %v1217, %v1215
      %v1260 = vpack.c.b16 %v1218, %v1216
      %v1261 = vpack.c.b16 %v1221, %v1219
      %v1262 = vpack.c.b16 %v1222, %v1220
      %v1263 = vpack.c.b16 %v1225, %v1223
      %v1264 = vpack.c.b16 %v1226, %v1224
      %v1265 = vpack.c.b16 %v1229, %v1227
      %v1266 = vpack.c.b16 %v1230, %v1228
      %v1267 = vpack.c.b16 %v1233, %v1231
      %v1268 = vpack.c.b16 %v1234, %v1232
      %v1269 = vpack.c.b16 %v1237, %v1235
      %v1270 = vpack.c.b16 %v1238, %v1236
      %1303 = vmatpush.bf16.msra.mxu0 %v1253
      %1304 = vmatpush.bf16.msra.mxu0 %v1251
      %1305 = vmatpush.bf16.msra.mxu0 %v1249
      %1306 = vmatpush.bf16.msra.mxu0 %v1247
      %1307 = vmatpush.bf16.msra.mxu0 %v1245
      %1308 = vmatpush.bf16.msra.mxu0 %v1243
      %1309 = vmatpush.bf16.msra.mxu0 %v1241
      %1310 = vmatpush.bf16.msra.mxu0 %v1239
      %1311 = vmatmul.bf16.gmra.mxu0 %v1102
      %v1312 = vpop.f32.mrf.mxu0
      %v1313 = vadd.f32 %v1139, %v1312
      %v1314 = vpop.f32.mrf.mxu0
      %1315 = vdwg.mxu0
      %1316 = vmatpush.bf16.msra.mxu0 %v1269
      %1317 = vmatpush.bf16.msra.mxu0 %v1267
      %1318 = vmatpush.bf16.msra.mxu0 %v1265
      %1319 = vmatpush.bf16.msra.mxu0 %v1263
      %1320 = vmatpush.bf16.msra.mxu0 %v1261
      %1321 = vmatpush.bf16.msra.mxu0 %v1259
      %1322 = vmatpush.bf16.msra.mxu0 %v1257
      %1323 = vmatpush.bf16.msra.mxu0 %v1255
      %1324 = vmatmul.bf16.gmra.mxu0 %v1103
      %v1325 = vpop.f32.mrf.mxu0
      %v1326 = vadd.f32 %v1313, %v1325
      %v1327 = vpop.f32.mrf.mxu0
      %1328 = vdwg.mxu0
      %1329 = vmatpush.bf16.msra.mxu0 %v1254
      %1330 = vmatpush.bf16.msra.mxu0 %v1252
      %1331 = vmatpush.bf16.msra.mxu0 %v1250
      %1332 = vmatpush.bf16.msra.mxu0 %v1248
      %1333 = vmatpush.bf16.msra.mxu0 %v1246
      %1334 = vmatpush.bf16.msra.mxu0 %v1244
      %1335 = vmatpush.bf16.msra.mxu0 %v1242
      %1336 = vmatpush.bf16.msra.mxu0 %v1240
      %1337 = vmatmul.bf16.gmra.mxu0 %v1102
      %v1338 = vpop.f32.mrf.mxu0
      %v1339 = vadd.f32 %v1140, %v1338
      %v1340 = vpop.f32.mrf.mxu0
      %1341 = vdwg.mxu0
      %1342 = vmatpush.bf16.msra.mxu0 %v1270
      %1343 = vmatpush.bf16.msra.mxu0 %v1268
      %1344 = vmatpush.bf16.msra.mxu0 %v1266
      %1345 = vmatpush.bf16.msra.mxu0 %v1264
      %1346 = vmatpush.bf16.msra.mxu0 %v1262
      %1347 = vmatpush.bf16.msra.mxu0 %v1260
      %1348 = vmatpush.bf16.msra.mxu0 %v1258
      %1349 = vmatpush.bf16.msra.mxu0 %v1256
      %1350 = vmatmul.bf16.gmra.mxu0 %v1103
      %v1351 = vpop.f32.mrf.mxu0
      %v1352 = vadd.f32 %v1339, %v1351
      %v1353 = vpop.f32.mrf.mxu0
      %1354 = vdwg.mxu0
      %v1355 = vpack.c.bf16 %v1326, %v1326
      %v1356 = vpack.c.bf16 %v1352, %v1352
      %s1357 = scalar_lea.vmem [#allocation4], 256
      %v1358 = vld [vmem:[%s1357] sm:$0xff]
      %v1359 = vld [vmem:[%s1357 + $0x8] sm:$0xff]
      %v1360 = vld [vmem:[%s1357 + $0x10] sm:$0xff]
      %v1361 = vld [vmem:[%s1357 + $0x18] sm:$0xff]
      %v1362 = vld [vmem:[%s1357 + $0x20] sm:$0xff]
      %v1363 = vld [vmem:[%s1357 + $0x28] sm:$0xff]
      %v1364 = vld [vmem:[%s1357 + $0x30] sm:$0xff]
      %v1365 = vld [vmem:[%s1357 + $0x38] sm:$0xff]
      %v1366 = vld [vmem:[%s1357 + $0x40] sm:$0xff]
      %v1367 = vld [vmem:[%s1357 + $0x48] sm:$0xff]
      %v1368 = vld [vmem:[%s1357 + $0x50] sm:$0xff]
      %v1369 = vld [vmem:[%s1357 + $0x58] sm:$0xff]
      %v1370 = vld [vmem:[%s1357 + $0x60] sm:$0xff]
      %v1371 = vld [vmem:[%s1357 + $0x68] sm:$0xff]
      %v1372 = vld [vmem:[%s1357 + $0x70] sm:$0xff]
      %v1373 = vld [vmem:[%s1357 + $0x78] sm:$0xff]
      %v1374 = vld [vmem:[%s1357 + $0x80] sm:$0xff]
      %v1375 = vld [vmem:[%s1357 + $0x88] sm:$0xff]
      %v1376 = vld [vmem:[%s1357 + $0x90] sm:$0xff]
      %v1377 = vld [vmem:[%s1357 + $0x98] sm:$0xff]
      %v1378 = vld [vmem:[%s1357 + $0xa0] sm:$0xff]
      %v1379 = vld [vmem:[%s1357 + $0xa8] sm:$0xff]
      %v1380 = vld [vmem:[%s1357 + $0xb0] sm:$0xff]
      %v1381 = vld [vmem:[%s1357 + $0xb8] sm:$0xff]
      %v1382 = vld [vmem:[%s1357 + $0xc0] sm:$0xff]
      %v1383 = vld [vmem:[%s1357 + $0xc8] sm:$0xff]
      %v1384 = vld [vmem:[%s1357 + $0xd0] sm:$0xff]
      %v1385 = vld [vmem:[%s1357 + $0xd8] sm:$0xff]
      %v1386 = vld [vmem:[%s1357 + $0xe0] sm:$0xff]
      %v1387 = vld [vmem:[%s1357 + $0xe8] sm:$0xff]
      %v1388 = vld [vmem:[%s1357 + $0xf0] sm:$0xff]
      %v1389 = vld [vmem:[%s1357 + $0xf8] sm:$0xff]
      %s1390 = scalar_lea.vmem %s9, 4
      %v1391 = vld [vmem:[%s1390] sm:$0x3]
      %v1393 = vperm.slane %v1391, 0
      %v1394 = vperm.slane %v1391, 1
      %v1429 = vunpack.c.l.b16 %v1358
      %v1430 = vunpack.c.h.b16 %v1358
      %v1431 = vunpack.c.l.b16 %v1359
      %v1432 = vunpack.c.h.b16 %v1359
      %v1433 = vunpack.c.l.b16 %v1360
      %v1434 = vunpack.c.h.b16 %v1360
      %v1435 = vunpack.c.l.b16 %v1361
      %v1436 = vunpack.c.h.b16 %v1361
      %v1437 = vunpack.c.l.b16 %v1362
      %v1438 = vunpack.c.h.b16 %v1362
      %v1439 = vunpack.c.l.b16 %v1363
      %v1440 = vunpack.c.h.b16 %v1363
      %v1441 = vunpack.c.l.b16 %v1364
      %v1442 = vunpack.c.h.b16 %v1364
      %v1443 = vunpack.c.l.b16 %v1365
      %v1444 = vunpack.c.h.b16 %v1365
      %v1445 = vunpack.c.l.b16 %v1366
      %v1446 = vunpack.c.h.b16 %v1366
      %v1447 = vunpack.c.l.b16 %v1367
      %v1448 = vunpack.c.h.b16 %v1367
      %v1449 = vunpack.c.l.b16 %v1368
      %v1450 = vunpack.c.h.b16 %v1368
      %v1451 = vunpack.c.l.b16 %v1369
      %v1452 = vunpack.c.h.b16 %v1369
      %v1453 = vunpack.c.l.b16 %v1370
      %v1454 = vunpack.c.h.b16 %v1370
      %v1455 = vunpack.c.l.b16 %v1371
      %v1456 = vunpack.c.h.b16 %v1371
      %v1457 = vunpack.c.l.b16 %v1372
      %v1458 = vunpack.c.h.b16 %v1372
      %v1459 = vunpack.c.l.b16 %v1373
      %v1460 = vunpack.c.h.b16 %v1373
      %v1461 = vunpack.c.l.b16 %v1374
      %v1462 = vunpack.c.h.b16 %v1374
      %v1463 = vunpack.c.l.b16 %v1375
      %v1464 = vunpack.c.h.b16 %v1375
      %v1465 = vunpack.c.l.b16 %v1376
      %v1466 = vunpack.c.h.b16 %v1376
      %v1467 = vunpack.c.l.b16 %v1377
      %v1468 = vunpack.c.h.b16 %v1377
      %v1469 = vunpack.c.l.b16 %v1378
      %v1470 = vunpack.c.h.b16 %v1378
      %v1471 = vunpack.c.l.b16 %v1379
      %v1472 = vunpack.c.h.b16 %v1379
      %v1473 = vunpack.c.l.b16 %v1380
      %v1474 = vunpack.c.h.b16 %v1380
      %v1475 = vunpack.c.l.b16 %v1381
      %v1476 = vunpack.c.h.b16 %v1381
      %v1477 = vunpack.c.l.b16 %v1382
      %v1478 = vunpack.c.h.b16 %v1382
      %v1479 = vunpack.c.l.b16 %v1383
      %v1480 = vunpack.c.h.b16 %v1383
      %v1481 = vunpack.c.l.b16 %v1384
      %v1482 = vunpack.c.h.b16 %v1384
      %v1483 = vunpack.c.l.b16 %v1385
      %v1484 = vunpack.c.h.b16 %v1385
      %v1485 = vunpack.c.l.b16 %v1386
      %v1486 = vunpack.c.h.b16 %v1386
      %v1487 = vunpack.c.l.b16 %v1387
      %v1488 = vunpack.c.h.b16 %v1387
      %v1489 = vunpack.c.l.b16 %v1388
      %v1490 = vunpack.c.h.b16 %v1388
      %v1491 = vunpack.c.l.b16 %v1389
      %v1492 = vunpack.c.h.b16 %v1389
      %v1493 = vpack.c.b16 %v1431, %v1429
      %v1494 = vpack.c.b16 %v1432, %v1430
      %v1495 = vpack.c.b16 %v1435, %v1433
      %v1496 = vpack.c.b16 %v1436, %v1434
      %v1497 = vpack.c.b16 %v1439, %v1437
      %v1498 = vpack.c.b16 %v1440, %v1438
      %v1499 = vpack.c.b16 %v1443, %v1441
      %v1500 = vpack.c.b16 %v1444, %v1442
      %v1501 = vpack.c.b16 %v1447, %v1445
      %v1502 = vpack.c.b16 %v1448, %v1446
      %v1503 = vpack.c.b16 %v1451, %v1449
      %v1504 = vpack.c.b16 %v1452, %v1450
      %v1505 = vpack.c.b16 %v1455, %v1453
      %v1506 = vpack.c.b16 %v1456, %v1454
      %v1507 = vpack.c.b16 %v1459, %v1457
      %v1508 = vpack.c.b16 %v1460, %v1458
      %v1509 = vpack.c.b16 %v1463, %v1461
      %v1510 = vpack.c.b16 %v1464, %v1462
      %v1511 = vpack.c.b16 %v1467, %v1465
      %v1512 = vpack.c.b16 %v1468, %v1466
      %v1513 = vpack.c.b16 %v1471, %v1469
      %v1514 = vpack.c.b16 %v1472, %v1470
      %v1515 = vpack.c.b16 %v1475, %v1473
      %v1516 = vpack.c.b16 %v1476, %v1474
      %v1517 = vpack.c.b16 %v1479, %v1477
      %v1518 = vpack.c.b16 %v1480, %v1478
      %v1519 = vpack.c.b16 %v1483, %v1481
      %v1520 = vpack.c.b16 %v1484, %v1482
      %v1521 = vpack.c.b16 %v1487, %v1485
      %v1522 = vpack.c.b16 %v1488, %v1486
      %v1523 = vpack.c.b16 %v1491, %v1489
      %v1524 = vpack.c.b16 %v1492, %v1490
      %1557 = vmatpush.bf16.msra.mxu0 %v1507
      %1558 = vmatpush.bf16.msra.mxu0 %v1505
      %1559 = vmatpush.bf16.msra.mxu0 %v1503
      %1560 = vmatpush.bf16.msra.mxu0 %v1501
      %1561 = vmatpush.bf16.msra.mxu0 %v1499
      %1562 = vmatpush.bf16.msra.mxu0 %v1497
      %1563 = vmatpush.bf16.msra.mxu0 %v1495
      %1564 = vmatpush.bf16.msra.mxu0 %v1493
      %1565 = vmatmul.bf16.gmra.mxu0 %v1355
      %v1566 = vpop.f32.mrf.mxu0
      %v1567 = vadd.f32 %v1393, %v1566
      %v1568 = vpop.f32.mrf.mxu0
      %1569 = vdwg.mxu0
      %1570 = vmatpush.bf16.msra.mxu0 %v1523
      %1571 = vmatpush.bf16.msra.mxu0 %v1521
      %1572 = vmatpush.bf16.msra.mxu0 %v1519
      %1573 = vmatpush.bf16.msra.mxu0 %v1517
      %1574 = vmatpush.bf16.msra.mxu0 %v1515
      %1575 = vmatpush.bf16.msra.mxu0 %v1513
      %1576 = vmatpush.bf16.msra.mxu0 %v1511
      %1577 = vmatpush.bf16.msra.mxu0 %v1509
      %1578 = vmatmul.bf16.gmra.mxu0 %v1356
      %v1579 = vpop.f32.mrf.mxu0
      %v1580 = vadd.f32 %v1567, %v1579
      %v1581 = vpop.f32.mrf.mxu0
      %1582 = vdwg.mxu0
      %1583 = vmatpush.bf16.msra.mxu0 %v1508
      %1584 = vmatpush.bf16.msra.mxu0 %v1506
      %1585 = vmatpush.bf16.msra.mxu0 %v1504
      %1586 = vmatpush.bf16.msra.mxu0 %v1502
      %1587 = vmatpush.bf16.msra.mxu0 %v1500
      %1588 = vmatpush.bf16.msra.mxu0 %v1498
      %1589 = vmatpush.bf16.msra.mxu0 %v1496
      %1590 = vmatpush.bf16.msra.mxu0 %v1494
      %1591 = vmatmul.bf16.gmra.mxu0 %v1355
      %v1592 = vpop.f32.mrf.mxu0
      %v1593 = vadd.f32 %v1394, %v1592
      %v1594 = vpop.f32.mrf.mxu0
      %1595 = vdwg.mxu0
      %1596 = vmatpush.bf16.msra.mxu0 %v1524
      %1597 = vmatpush.bf16.msra.mxu0 %v1522
      %1598 = vmatpush.bf16.msra.mxu0 %v1520
      %1599 = vmatpush.bf16.msra.mxu0 %v1518
      %1600 = vmatpush.bf16.msra.mxu0 %v1516
      %1601 = vmatpush.bf16.msra.mxu0 %v1514
      %1602 = vmatpush.bf16.msra.mxu0 %v1512
      %1603 = vmatpush.bf16.msra.mxu0 %v1510
      %1604 = vmatmul.bf16.gmra.mxu0 %v1356
      %v1605 = vpop.f32.mrf.mxu0
      %v1606 = vadd.f32 %v1593, %v1605
      %v1607 = vpop.f32.mrf.mxu0
      %1608 = vdwg.mxu0
      %v1609 = vpack.c.bf16 %v1580, %v1580
      %v1610 = vpack.c.bf16 %v1606, %v1606
      %s1611 = scalar_lea.vmem [#allocation4], 512
      %v1612 = vld [vmem:[%s1611] sm:$0xff]
      %v1613 = vld [vmem:[%s1611 + $0x8] sm:$0xff]
      %v1614 = vld [vmem:[%s1611 + $0x10] sm:$0xff]
      %v1615 = vld [vmem:[%s1611 + $0x18] sm:$0xff]
      %v1616 = vld [vmem:[%s1611 + $0x20] sm:$0xff]
      %v1617 = vld [vmem:[%s1611 + $0x28] sm:$0xff]
      %v1618 = vld [vmem:[%s1611 + $0x30] sm:$0xff]
      %v1619 = vld [vmem:[%s1611 + $0x38] sm:$0xff]
      %v1620 = vld [vmem:[%s1611 + $0x40] sm:$0xff]
      %v1621 = vld [vmem:[%s1611 + $0x48] sm:$0xff]
      %v1622 = vld [vmem:[%s1611 + $0x50] sm:$0xff]
      %v1623 = vld [vmem:[%s1611 + $0x58] sm:$0xff]
      %v1624 = vld [vmem:[%s1611 + $0x60] sm:$0xff]
      %v1625 = vld [vmem:[%s1611 + $0x68] sm:$0xff]
      %v1626 = vld [vmem:[%s1611 + $0x70] sm:$0xff]
      %v1627 = vld [vmem:[%s1611 + $0x78] sm:$0xff]
      %v1628 = vld [vmem:[%s1611 + $0x80] sm:$0xff]
      %v1629 = vld [vmem:[%s1611 + $0x88] sm:$0xff]
      %v1630 = vld [vmem:[%s1611 + $0x90] sm:$0xff]
      %v1631 = vld [vmem:[%s1611 + $0x98] sm:$0xff]
      %v1632 = vld [vmem:[%s1611 + $0xa0] sm:$0xff]
      %v1633 = vld [vmem:[%s1611 + $0xa8] sm:$0xff]
      %v1634 = vld [vmem:[%s1611 + $0xb0] sm:$0xff]
      %v1635 = vld [vmem:[%s1611 + $0xb8] sm:$0xff]
      %v1636 = vld [vmem:[%s1611 + $0xc0] sm:$0xff]
      %v1637 = vld [vmem:[%s1611 + $0xc8] sm:$0xff]
      %v1638 = vld [vmem:[%s1611 + $0xd0] sm:$0xff]
      %v1639 = vld [vmem:[%s1611 + $0xd8] sm:$0xff]
      %v1640 = vld [vmem:[%s1611 + $0xe0] sm:$0xff]
      %v1641 = vld [vmem:[%s1611 + $0xe8] sm:$0xff]
      %v1642 = vld [vmem:[%s1611 + $0xf0] sm:$0xff]
      %v1643 = vld [vmem:[%s1611 + $0xf8] sm:$0xff]
      %s1644 = scalar_lea.vmem %s9, 6
      %v1645 = vld [vmem:[%s1644] sm:$0x3]
      %v1647 = vperm.slane %v1645, 0
      %v1648 = vperm.slane %v1645, 1
      %v1683 = vunpack.c.l.b16 %v1612
      %v1684 = vunpack.c.h.b16 %v1612
      %v1685 = vunpack.c.l.b16 %v1613
      %v1686 = vunpack.c.h.b16 %v1613
      %v1687 = vunpack.c.l.b16 %v1614
      %v1688 = vunpack.c.h.b16 %v1614
      %v1689 = vunpack.c.l.b16 %v1615
      %v1690 = vunpack.c.h.b16 %v1615
      %v1691 = vunpack.c.l.b16 %v1616
      %v1692 = vunpack.c.h.b16 %v1616
      %v1693 = vunpack.c.l.b16 %v1617
      %v1694 = vunpack.c.h.b16 %v1617
      %v1695 = vunpack.c.l.b16 %v1618
      %v1696 = vunpack.c.h.b16 %v1618
      %v1697 = vunpack.c.l.b16 %v1619
      %v1698 = vunpack.c.h.b16 %v1619
      %v1699 = vunpack.c.l.b16 %v1620
      %v1700 = vunpack.c.h.b16 %v1620
      %v1701 = vunpack.c.l.b16 %v1621
      %v1702 = vunpack.c.h.b16 %v1621
      %v1703 = vunpack.c.l.b16 %v1622
      %v1704 = vunpack.c.h.b16 %v1622
      %v1705 = vunpack.c.l.b16 %v1623
      %v1706 = vunpack.c.h.b16 %v1623
      %v1707 = vunpack.c.l.b16 %v1624
      %v1708 = vunpack.c.h.b16 %v1624
      %v1709 = vunpack.c.l.b16 %v1625
      %v1710 = vunpack.c.h.b16 %v1625
      %v1711 = vunpack.c.l.b16 %v1626
      %v1712 = vunpack.c.h.b16 %v1626
      %v1713 = vunpack.c.l.b16 %v1627
      %v1714 = vunpack.c.h.b16 %v1627
      %v1715 = vunpack.c.l.b16 %v1628
      %v1716 = vunpack.c.h.b16 %v1628
      %v1717 = vunpack.c.l.b16 %v1629
      %v1718 = vunpack.c.h.b16 %v1629
      %v1719 = vunpack.c.l.b16 %v1630
      %v1720 = vunpack.c.h.b16 %v1630
      %v1721 = vunpack.c.l.b16 %v1631
      %v1722 = vunpack.c.h.b16 %v1631
      %v1723 = vunpack.c.l.b16 %v1632
      %v1724 = vunpack.c.h.b16 %v1632
      %v1725 = vunpack.c.l.b16 %v1633
      %v1726 = vunpack.c.h.b16 %v1633
      %v1727 = vunpack.c.l.b16 %v1634
      %v1728 = vunpack.c.h.b16 %v1634
      %v1729 = vunpack.c.l.b16 %v1635
      %v1730 = vunpack.c.h.b16 %v1635
      %v1731 = vunpack.c.l.b16 %v1636
      %v1732 = vunpack.c.h.b16 %v1636
      %v1733 = vunpack.c.l.b16 %v1637
      %v1734 = vunpack.c.h.b16 %v1637
      %v1735 = vunpack.c.l.b16 %v1638
      %v1736 = vunpack.c.h.b16 %v1638
      %v1737 = vunpack.c.l.b16 %v1639
      %v1738 = vunpack.c.h.b16 %v1639
      %v1739 = vunpack.c.l.b16 %v1640
      %v1740 = vunpack.c.h.b16 %v1640
      %v1741 = vunpack.c.l.b16 %v1641
      %v1742 = vunpack.c.h.b16 %v1641
      %v1743 = vunpack.c.l.b16 %v1642
      %v1744 = vunpack.c.h.b16 %v1642
      %v1745 = vunpack.c.l.b16 %v1643
      %v1746 = vunpack.c.h.b16 %v1643
      %v1747 = vpack.c.b16 %v1685, %v1683
      %v1748 = vpack.c.b16 %v1686, %v1684
      %v1749 = vpack.c.b16 %v1689, %v1687
      %v1750 = vpack.c.b16 %v1690, %v1688
      %v1751 = vpack.c.b16 %v1693, %v1691
      %v1752 = vpack.c.b16 %v1694, %v1692
      %v1753 = vpack.c.b16 %v1697, %v1695
      %v1754 = vpack.c.b16 %v1698, %v1696
      %v1755 = vpack.c.b16 %v1701, %v1699
      %v1756 = vpack.c.b16 %v1702, %v1700
      %v1757 = vpack.c.b16 %v1705, %v1703
      %v1758 = vpack.c.b16 %v1706, %v1704
      %v1759 = vpack.c.b16 %v1709, %v1707
      %v1760 = vpack.c.b16 %v1710, %v1708
      %v1761 = vpack.c.b16 %v1713, %v1711
      %v1762 = vpack.c.b16 %v1714, %v1712
      %v1763 = vpack.c.b16 %v1717, %v1715
      %v1764 = vpack.c.b16 %v1718, %v1716
      %v1765 = vpack.c.b16 %v1721, %v1719
      %v1766 = vpack.c.b16 %v1722, %v1720
      %v1767 = vpack.c.b16 %v1725, %v1723
      %v1768 = vpack.c.b16 %v1726, %v1724
      %v1769 = vpack.c.b16 %v1729, %v1727
      %v1770 = vpack.c.b16 %v1730, %v1728
      %v1771 = vpack.c.b16 %v1733, %v1731
      %v1772 = vpack.c.b16 %v1734, %v1732
      %v1773 = vpack.c.b16 %v1737, %v1735
      %v1774 = vpack.c.b16 %v1738, %v1736
      %v1775 = vpack.c.b16 %v1741, %v1739
      %v1776 = vpack.c.b16 %v1742, %v1740
      %v1777 = vpack.c.b16 %v1745, %v1743
      %v1778 = vpack.c.b16 %v1746, %v1744
      %1811 = vmatpush.bf16.msra.mxu0 %v1761
      %1812 = vmatpush.bf16.msra.mxu0 %v1759
      %1813 = vmatpush.bf16.msra.mxu0 %v1757
      %1814 = vmatpush.bf16.msra.mxu0 %v1755
      %1815 = vmatpush.bf16.msra.mxu0 %v1753
      %1816 = vmatpush.bf16.msra.mxu0 %v1751
      %1817 = vmatpush.bf16.msra.mxu0 %v1749
      %1818 = vmatpush.bf16.msra.mxu0 %v1747
      %1819 = vmatmul.bf16.gmra.mxu0 %v1609
      %v1820 = vpop.f32.mrf.mxu0
      %v1821 = vadd.f32 %v1647, %v1820
      %v1822 = vpop.f32.mrf.mxu0
      %1823 = vdwg.mxu0
      %1824 = vmatpush.bf16.msra.mxu0 %v1777
      %1825 = vmatpush.bf16.msra.mxu0 %v1775
      %1826 = vmatpush.bf16.msra.mxu0 %v1773
      %1827 = vmatpush.bf16.msra.mxu0 %v1771
      %1828 = vmatpush.bf16.msra.mxu0 %v1769
      %1829 = vmatpush.bf16.msra.mxu0 %v1767
      %1830 = vmatpush.bf16.msra.mxu0 %v1765
      %1831 = vmatpush.bf16.msra.mxu0 %v1763
      %1832 = vmatmul.bf16.gmra.mxu0 %v1610
      %v1833 = vpop.f32.mrf.mxu0
      %v1834 = vadd.f32 %v1821, %v1833
      %v1835 = vpop.f32.mrf.mxu0
      %1836 = vdwg.mxu0
      %1837 = vmatpush.bf16.msra.mxu0 %v1762
      %1838 = vmatpush.bf16.msra.mxu0 %v1760
      %1839 = vmatpush.bf16.msra.mxu0 %v1758
      %1840 = vmatpush.bf16.msra.mxu0 %v1756
      %1841 = vmatpush.bf16.msra.mxu0 %v1754
      %1842 = vmatpush.bf16.msra.mxu0 %v1752
      %1843 = vmatpush.bf16.msra.mxu0 %v1750
      %1844 = vmatpush.bf16.msra.mxu0 %v1748
      %1845 = vmatmul.bf16.gmra.mxu0 %v1609
      %v1846 = vpop.f32.mrf.mxu0
      %v1847 = vadd.f32 %v1648, %v1846
      %v1848 = vpop.f32.mrf.mxu0
      %1849 = vdwg.mxu0
      %1850 = vmatpush.bf16.msra.mxu0 %v1778
      %1851 = vmatpush.bf16.msra.mxu0 %v1776
      %1852 = vmatpush.bf16.msra.mxu0 %v1774
      %1853 = vmatpush.bf16.msra.mxu0 %v1772
      %1854 = vmatpush.bf16.msra.mxu0 %v1770
      %1855 = vmatpush.bf16.msra.mxu0 %v1768
      %1856 = vmatpush.bf16.msra.mxu0 %v1766
      %1857 = vmatpush.bf16.msra.mxu0 %v1764
      %1858 = vmatmul.bf16.gmra.mxu0 %v1610
      %v1859 = vpop.f32.mrf.mxu0
      %v1860 = vadd.f32 %v1847, %v1859
      %v1861 = vpop.f32.mrf.mxu0
      %1862 = vdwg.mxu0
      %v1863 = vpack.c.bf16 %v1834, %v1834
      %v1864 = vpack.c.bf16 %v1860, %v1860
      %v1865 = vld [vmem:[%s10] sm:$0xf]
      %v1866 = vld [vmem:[%s10 + $0x4] sm:$0xf]
      %v1867 = vld [vmem:[%s10 + $0x8] sm:$0xf]
      %v1868 = vld [vmem:[%s10 + $0xc] sm:$0xf]
      %v1869 = vld [vmem:[%s10 + $0x10] sm:$0xf]
      %v1870 = vld [vmem:[%s10 + $0x14] sm:$0xf]
      %v1871 = vld [vmem:[%s10 + $0x18] sm:$0xf]
      %v1872 = vld [vmem:[%s10 + $0x1c] sm:$0xf]
      %v1873 = vld [vmem:[%s10 + $0x20] sm:$0xf]
      %v1874 = vld [vmem:[%s10 + $0x24] sm:$0xf]
      %v1875 = vld [vmem:[%s10 + $0x28] sm:$0xf]
      %v1876 = vld [vmem:[%s10 + $0x2c] sm:$0xf]
      %v1877 = vld [vmem:[%s10 + $0x30] sm:$0xf]
      %v1878 = vld [vmem:[%s10 + $0x34] sm:$0xf]
      %v1879 = vld [vmem:[%s10 + $0x38] sm:$0xf]
      %v1880 = vld [vmem:[%s10 + $0x3c] sm:$0xf]
      %v1881 = vld [vmem:[%s10 + $0x40] sm:$0xf]
      %v1882 = vld [vmem:[%s10 + $0x44] sm:$0xf]
      %v1883 = vld [vmem:[%s10 + $0x48] sm:$0xf]
      %v1884 = vld [vmem:[%s10 + $0x4c] sm:$0xf]
      %v1885 = vld [vmem:[%s10 + $0x50] sm:$0xf]
      %v1886 = vld [vmem:[%s10 + $0x54] sm:$0xf]
      %v1887 = vld [vmem:[%s10 + $0x58] sm:$0xf]
      %v1888 = vld [vmem:[%s10 + $0x5c] sm:$0xf]
      %v1889 = vld [vmem:[%s10 + $0x60] sm:$0xf]
      %v1890 = vld [vmem:[%s10 + $0x64] sm:$0xf]
      %v1891 = vld [vmem:[%s10 + $0x68] sm:$0xf]
      %v1892 = vld [vmem:[%s10 + $0x6c] sm:$0xf]
      %v1893 = vld [vmem:[%s10 + $0x70] sm:$0xf]
      %v1894 = vld [vmem:[%s10 + $0x74] sm:$0xf]
      %v1895 = vld [vmem:[%s10 + $0x78] sm:$0xf]
      %v1896 = vld [vmem:[%s10 + $0x7c] sm:$0xf]
      %v1897 = vld [vmem:[%s11] sm:$0x1]
      %v1899 = vperm.slane %v1897, 0
      %v1933 = vunpack.c.l.b16 %v1865
      %v1934 = vunpack.c.l.b16 %v1866
      %v1935 = vunpack.c.l.b16 %v1867
      %v1936 = vunpack.c.l.b16 %v1868
      %v1937 = vunpack.c.l.b16 %v1869
      %v1938 = vunpack.c.l.b16 %v1870
      %v1939 = vunpack.c.l.b16 %v1871
      %v1940 = vunpack.c.l.b16 %v1872
      %v1941 = vunpack.c.l.b16 %v1873
      %v1942 = vunpack.c.l.b16 %v1874
      %v1943 = vunpack.c.l.b16 %v1875
      %v1944 = vunpack.c.l.b16 %v1876
      %v1945 = vunpack.c.l.b16 %v1877
      %v1946 = vunpack.c.l.b16 %v1878
      %v1947 = vunpack.c.l.b16 %v1879
      %v1948 = vunpack.c.l.b16 %v1880
      %v1949 = vunpack.c.l.b16 %v1881
      %v1950 = vunpack.c.l.b16 %v1882
      %v1951 = vunpack.c.l.b16 %v1883
      %v1952 = vunpack.c.l.b16 %v1884
      %v1953 = vunpack.c.l.b16 %v1885
      %v1954 = vunpack.c.l.b16 %v1886
      %v1955 = vunpack.c.l.b16 %v1887
      %v1956 = vunpack.c.l.b16 %v1888
      %v1957 = vunpack.c.l.b16 %v1889
      %v1958 = vunpack.c.l.b16 %v1890
      %v1959 = vunpack.c.l.b16 %v1891
      %v1960 = vunpack.c.l.b16 %v1892
      %v1961 = vunpack.c.l.b16 %v1893
      %v1962 = vunpack.c.l.b16 %v1894
      %v1963 = vunpack.c.l.b16 %v1895
      %v1964 = vunpack.c.l.b16 %v1896
      %v1965 = vpack.c.b16 %v1934, %v1933
      %v1966 = vpack.c.b16 %v1936, %v1935
      %v1967 = vpack.c.b16 %v1938, %v1937
      %v1968 = vpack.c.b16 %v1940, %v1939
      %v1969 = vpack.c.b16 %v1942, %v1941
      %v1970 = vpack.c.b16 %v1944, %v1943
      %v1971 = vpack.c.b16 %v1946, %v1945
      %v1972 = vpack.c.b16 %v1948, %v1947
      %v1973 = vpack.c.b16 %v1950, %v1949
      %v1974 = vpack.c.b16 %v1952, %v1951
      %v1975 = vpack.c.b16 %v1954, %v1953
      %v1976 = vpack.c.b16 %v1956, %v1955
      %v1977 = vpack.c.b16 %v1958, %v1957
      %v1978 = vpack.c.b16 %v1960, %v1959
      %v1979 = vpack.c.b16 %v1962, %v1961
      %v1980 = vpack.c.b16 %v1964, %v1963
      %1997 = vmatpush.bf16.msra.mxu0 %v1972
      %1998 = vmatpush.bf16.msra.mxu0 %v1971
      %1999 = vmatpush.bf16.msra.mxu0 %v1970
      %2000 = vmatpush.bf16.msra.mxu0 %v1969
      %2001 = vmatpush.bf16.msra.mxu0 %v1968
      %2002 = vmatpush.bf16.msra.mxu0 %v1967
      %2003 = vmatpush.bf16.msra.mxu0 %v1966
      %2004 = vmatpush.bf16.msra.mxu0 %v1965
      %2005 = vmatmul.bf16.gmra.mxu0 %v1863
      %v2006 = vpop.f32.mrf.mxu0
      %v2007 = vadd.f32 %v1899, %v2006
      %v2008 = vpop.f32.mrf.mxu0
      %2009 = vdwg.mxu0
      %2010 = vmatpush.bf16.msra.mxu0 %v1980
      %2011 = vmatpush.bf16.msra.mxu0 %v1979
      %2012 = vmatpush.bf16.msra.mxu0 %v1978
      %2013 = vmatpush.bf16.msra.mxu0 %v1977
      %2014 = vmatpush.bf16.msra.mxu0 %v1976
      %2015 = vmatpush.bf16.msra.mxu0 %v1975
      %2016 = vmatpush.bf16.msra.mxu0 %v1974
      %2017 = vmatpush.bf16.msra.mxu0 %v1973
      %2018 = vmatmul.bf16.gmra.mxu0 %v1864
      %v2019 = vpop.f32.mrf.mxu0
      %v2020 = vadd.f32 %v2007, %v2019
      %v2021 = vpop.f32.mrf.mxu0
      %2022 = vdwg.mxu0
      %v2023 = vmul.f32 %v2020, %v1052
      %v2024 = vmul.f32 %v1054, 1.442695
      %v2025 = vpow.pop %v2024
      %v2026 = vmul.f32 %v76, %v2025
      %v2027 = vmul.f32 %v1052, %v2026
      %v2028 = vadd.f32 %v2027, %v2023
      %v2029 = vadd.f32 %v2028, %v82
      %2030 = vst.msk [vmem:[%s12] sm:$0xff] %vm95, %v2029
    $region61: #{tpu_custom_call.1} parent=1 // pred_fallthru
      _
    // Predicated region
    $region62: #{tpu_custom_call.1} parent=1 // pred_check
      _
    $region63: #{tpu_custom_call.1} parent=1 // pred_check_branch
      %2032 = sbr.rel (0) target = $region65
    $region64: #{tpu_custom_call.1} parent=1 // pred_region
      _
    $region65: #{tpu_custom_call.1} parent=1 // pred_fallthru
      _
    // Predicated region
    $region66: #{tpu_custom_call.1} parent=1 // pred_check
      _
    $region67: #{tpu_custom_call.1} parent=1 // pred_check_branch
      %2034 = sbr.rel (0) target = $region69
    $region68: #{tpu_custom_call.1} parent=1 // pred_region
      _
    $region69: #{tpu_custom_call.1} parent=1 // pred_fallthru
      _
    // Predicated region
    $region70: #{tpu_custom_call.1} parent=1 // pred_check
      _
    $region71: #{tpu_custom_call.1} parent=1 // pred_check_branch
      %2036 = sbr.rel (0) target = $region73
    $region72: #{tpu_custom_call.1} parent=1 // pred_region
      _
    $region73: #{tpu_custom_call.1} parent=1 // pred_fallthru
      _
    // Predicated region
    $region74: #{tpu_custom_call.1} parent=1 // pred_check
      _
    $region75: #{tpu_custom_call.1} parent=1 // pred_check_branch
      %2038 = sbr.rel (0) target = $region77
    $region76: #{tpu_custom_call.1} parent=1 // pred_region
      _
    $region77: #{tpu_custom_call.1} parent=1 // pred_fallthru
      _
    %2039 = vsyncpa [#allocation3], 1
    %2040 = vsyncpa [#allocation5], 1

</llo_original>
